<compile_context>
chip_gen: v6e
topology: v6e:2x2x1
jax: 0.10.0
libtpu: 0.0.40
codegen_flags: <defaults>
</compile_context>

<pallas_src>
import jax
import jax.numpy as jnp
from jax.experimental import pallas as pl
from jax.experimental.pallas import tpu as pltpu


# -----------------------------------------------------------------------------
# Fused kernel: n-gram conv -> max -> tanh -> hoisted LSTM input projection
# (VMEM scratch) -> LSTM recurrence with per-chunk max-length loop bound.
# -----------------------------------------------------------------------------
def qproc_kernel(cmax_ref,                                  # SMEM scalar prefetch
                 x_ref, wng_ref, bng_ref, wih_ref, bg_ref, whh_ref, lenv_ref,
                 p_ref, q_ref,
                 gx_ref):                                   # VMEM scratch
    L, TB, E = x_ref.shape

    # ---------------- phrase stage (single MXU matmul, K=E, N=6E) ------------
    x2d = x_ref[...].reshape(L * TB, E)                     # bf16, tile-aligned merge
    y = jnp.dot(x2d, wng_ref[...], preferred_element_type=jnp.float32)
    y3 = y.reshape(L, TB, 6 * E)                            # f32

    bng = bng_ref[...]                                      # (1, 3E) f32
    b_uni = bng[0:1, 0 * E:1 * E].reshape(1, 1, E)
    b_bi = bng[0:1, 1 * E:2 * E].reshape(1, 1, E)
    b_tri = bng[0:1, 2 * E:3 * E].reshape(1, 1, E)

    uni = y3[:, :, 0 * E:1 * E] + b_uni                     # x[t]   @ W1
    bi = y3[:, :, 1 * E:2 * E] + b_bi                       # x[t]   @ W2[tap1]
    tri = y3[:, :, 2 * E:3 * E] + b_tri                     # x[t]   @ W3[tap1]
    if L > 1:
        zero = jnp.zeros((1, TB, E), jnp.float32)
        # shifted contributions: row t picks up x[t-1] / x[t+1] products
        bi = bi + jnp.concatenate([zero, y3[:L - 1, :, 3 * E:4 * E]], axis=0)
        tri = (tri
               + jnp.concatenate([zero, y3[:L - 1, :, 4 * E:5 * E]], axis=0)
               + jnp.concatenate([y3[1:, :, 5 * E:6 * E], zero], axis=0))

    p = jnp.tanh(jnp.maximum(jnp.maximum(uni, bi), tri))    # (L, TB, E) f32
    p_ref[...] = p                                          # dropout(0.5) == identity (eval)

    # Hoisted (time-invariant) LSTM input projection, kept in VMEM (never hits HBM):
    # gx = p @ W_ih^T + (b_ih + b_hh)
    gx = jnp.dot(p.reshape(L * TB, E).astype(jnp.bfloat16), wih_ref[...],
                 preferred_element_type=jnp.float32) + bg_ref[...]
    gx_ref[...] = gx.reshape(L, TB, 4 * E)

    # ---------------- LSTM recurrence ----------------------------------------
    lens_col = lenv_ref[...]                                # (TB, 1) int32
    max_len = jnp.minimum(cmax_ref[pl.program_id(0)], L)    # per-chunk loop bound

    def step(t, carry):
        h, c = carry
        gates = gx_ref[t] + jnp.dot(h.astype(jnp.bfloat16), whh_ref[...],
                                    preferred_element_type=jnp.float32)  # (TB, 4E)
        # PyTorch gate order i, f, g, o; element-wise math in f32.
        i_g = jax.nn.sigmoid(gates[:, 0 * E:1 * E])
        f_g = jax.nn.sigmoid(gates[:, 1 * E:2 * E])
        g_g = jnp.tanh(gates[:, 2 * E:3 * E])
        o_g = jax.nn.sigmoid(gates[:, 3 * E:4 * E])
        c_new = f_g * c + i_g * g_g
        h_new = o_g * jnp.tanh(c_new)
        # pack/pad_packed semantics: zero the output past each row's length.
        q_ref[t] = jnp.where(t < lens_col, h_new, 0.0)
        return h_new, c_new

    h0 = jnp.zeros((TB, E), jnp.float32)
    c0 = jnp.zeros((TB, E), jnp.float32)
    jax.lax.fori_loop(0, max_len, step, (h0, c0))

    # zero-fill the skipped (all-padded) timesteps
    def zero_tail(t, _):
        q_ref[t] = jnp.zeros((TB, E), jnp.float32)
        return 0
    jax.lax.fori_loop(max_len, L, zero_tail, 0)


# -----------------------------------------------------------------------------
# Parameter construction (deterministic, shapes as in the PyTorch __init__)
# -----------------------------------------------------------------------------
def init_params(key, q_vocab_size, embedding_size):
    E = embedding_size
    ks = jax.random.split(key, 16)
    u = lambda k, shape, s: jax.random.uniform(k, shape, jnp.float32, -s, s)

    emb = jax.random.normal(ks[0], (q_vocab_size, E), jnp.float32)
    emb = emb.at[0].set(0.0)                                # padding_idx=0

    s1 = 1.0 / (E * 1) ** 0.5
    s2 = 1.0 / (E * 2) ** 0.5
    s3 = 1.0 / (E * 3) ** 0.5
    sl = 1.0 / E ** 0.5

    return dict(
        emb=emb,
        conv1_w=u(ks[1], (E, E, 1), s1), conv1_b=u(ks[2], (E,), s1),
        conv2_w=u(ks[3], (E, E, 2), s2), conv2_b=u(ks[4], (E,), s2),
        conv3_w=u(ks[5], (E, E, 3), s3), conv3_b=u(ks[6], (E,), s3),
        lstm_w_ih=u(ks[7], (4 * E, E), sl), lstm_w_hh=u(ks[8], (4 * E, E), sl),
        lstm_b_ih=u(ks[9], (4 * E,), sl), lstm_b_hh=u(ks[10], (4 * E,), sl),
    )


# -----------------------------------------------------------------------------
# Tiling helpers
# -----------------------------------------------------------------------------
def _round_up(n, m):
    return (n + m - 1) // m * m


def _vmem_need(L, tb, E):
    """Rough fused-kernel VMEM footprint for one batch chunk (double-buffered I/O)."""
    return (2 * L * tb * E * 2               # x input block, bf16, 2 buffers
            + 2 * 2 * L * tb * E * 4         # p, q output blocks, f32, 2 buffers each
            + L * tb * 4 * E * 4             # gx scratch, f32
            + 2 * 2 * (6 * E * E + 8 * E * E)  # bf16 weights, 2 buffers
            + (1 << 16))                     # biases / lens / slack


def _batch_tile(bp, L, E):
    """Multiple of 16 dividing bp; targets >=128 rows (well-shaped recurrent matmul),
    keeps >=2 chunks when bp allows (v7x 2-TC sharding), stays under ~40 MiB VMEM."""
    tb = min(bp, 256)
    if bp >= 32:
        tb = min(tb, bp // 2)                # at least 2 chunks when possible
    tb = max(16, (tb // 16) * 16)
    while bp % tb:
        tb -= 16
    while tb > 16 and _vmem_need(L, tb, E) > (40 << 20):
        tb -= 16
        while bp % tb:
            tb -= 16
    return tb


# -----------------------------------------------------------------------------
# Forward wrapper
# -----------------------------------------------------------------------------
@jax.jit
def question_processor_forward(params, question_encoding, question_length):
    emb = params["emb"]
    E = emb.shape[1]
    B, L = question_encoding.shape

    # --- word embedding (module output, f32, batch-major) ------------------
    w_embed = jnp.take(emb, question_encoding, axis=0)      # (B, L, E) f32

    # --- kernel input: gather time-major, bf16 (no HBM transpose pass) ----
    BP = _round_up(B, 16)
    pad = BP - B
    enc_t = question_encoding.T                              # (L, B)
    lens = question_length.astype(jnp.int32)
    if pad:
        enc_t = jnp.pad(enc_t, ((0, 0), (0, pad)))           # pad token id 0
        lens = jnp.pad(lens, (0, pad))                       # padded rows: length 0
    x_tm = jnp.take(emb.astype(jnp.bfloat16), enc_t, axis=0)  # (L, BP, E) bf16
    lens_col = lens.reshape(BP, 1)

    tb = _batch_tile(BP, L, E)
    n_chunks = BP // tb
    chunk_max = jnp.max(lens.reshape(n_chunks, tb), axis=1).astype(jnp.int32)

    # --- split n-gram weight: x @ [center(3E) | prev(2E) | next(E)] --------
    w1 = params["conv1_w"][:, :, 0]                          # (E, E)
    w2 = params["conv2_w"]                                   # (E, E, 2)
    w3 = params["conv3_w"]                                   # (E, E, 3)
    w_ng = jnp.concatenate(
        [w1.T, w2[:, :, 1].T, w3[:, :, 1].T,                 # x[t]   taps
         w2[:, :, 0].T, w3[:, :, 0].T,                       # x[t-1] taps
         w3[:, :, 2].T],                                     # x[t+1] tap
        axis=1).astype(jnp.bfloat16)                         # (E, 6E)
    b_ng = jnp.concatenate(
        [params["conv1_b"], params["conv2_b"], params["conv3_b"]]).reshape(1, 3 * E)

    wih_t = params["lstm_w_ih"].T.astype(jnp.bfloat16)       # (E, 4E)
    whh_t = params["lstm_w_hh"].T.astype(jnp.bfloat16)       # (E, 4E)
    b_g = (params["lstm_b_ih"] + params["lstm_b_hh"]).reshape(1, 4 * E)

    vmem_limit = int(min(max(_vmem_need(L, tb, E) + (6 << 20), 32 << 20), 48 << 20))

    grid_spec = pltpu.PrefetchScalarGridSpec(
        num_scalar_prefetch=1,                               # per-chunk max length (SMEM)
        grid=(n_chunks,),
        in_specs=[
            pl.BlockSpec((L, tb, E), lambda b, cm: (0, b, 0)),      # x (bf16)
            # Weight specs are block-invariant (fetched once per core); for very
            # large E, pipeline_mode=pl.Buffered(1) on them would halve their VMEM.
            pl.BlockSpec((E, 6 * E), lambda b, cm: (0, 0)),         # w_ng
            pl.BlockSpec((1, 3 * E), lambda b, cm: (0, 0)),         # conv biases
            pl.BlockSpec((E, 4 * E), lambda b, cm: (0, 0)),         # W_ih^T
            pl.BlockSpec((1, 4 * E), lambda b, cm: (0, 0)),         # b_ih + b_hh
            pl.BlockSpec((E, 4 * E), lambda b, cm: (0, 0)),         # W_hh^T
            pl.BlockSpec((tb, 1), lambda b, cm: (b, 0)),            # lengths column
        ],
        out_specs=(
            pl.BlockSpec((L, tb, E), lambda b, cm: (0, b, 0)),      # p_embed (time-major)
            pl.BlockSpec((L, tb, E), lambda b, cm: (0, b, 0)),      # q_embed (time-major)
        ),
        scratch_shapes=[pltpu.VMEM((L, tb, 4 * E), jnp.float32)],   # gates_x stays on-chip
    )

    p_tm, q_tm = pl.pallas_call(
        qproc_kernel,
        out_shape=(jax.ShapeDtypeStruct((L, BP, E), jnp.float32),
                   jax.ShapeDtypeStruct((L, BP, E), jnp.float32)),
        grid_spec=grid_spec,
        compiler_params=pltpu.CompilerParams(
            dimension_semantics=("parallel",),
            vmem_limit_bytes=vmem_limit),
    )(chunk_max, x_tm, w_ng, b_ng, wih_t, b_g, whh_t, lens_col)

    # TODO(synk): outputs are time-major; the (L,B,E)->(B,L,E) transposes below are
    # left to XLA (bulk, lane-dense kernel stores were preferred over per-step
    # strided batch-major stores inside the recurrence).
    p_embed = jnp.transpose(p_tm[:, :B, :], (1, 0, 2))       # (B, L, E)
    q_embed = jnp.transpose(q_tm[:, :B, :], (1, 0, 2))       # (B, L, E)
    return w_embed, p_embed, q_embed


# -----------------------------------------------------------------------------
if __name__ == "__main__":
    B, L, E, V = 2, 8, 128, 50   # E=128 keeps every store / gate slice lane-dense

    key = jax.random.PRNGKey(0)
    k_params, k_tok = jax.random.split(key)
    params = init_params(k_params, q_vocab_size=V, embedding_size=E)

    # lengths sorted descending (pack_padded_sequence enforce_sorted=True)
    question_length = jnp.array([8, 5], dtype=jnp.int32)

    tokens = jax.random.randint(k_tok, (B, L), 1, V, dtype=jnp.int32)
    pos = jnp.arange(L)[None, :]
    question_encoding = jnp.where(pos < question_length[:, None], tokens, 0)  # pad id 0

    w_embed, p_embed, q_embed = question_processor_forward(
        params, question_encoding, question_length)
    jax.block_until_ready((w_embed, p_embed, q_embed))

    assert w_embed.shape == (B, L, E)
    assert p_embed.shape == (B, L, E)
    assert q_embed.shape == (B, L, E)
    print("KERNEL_OK")
</pallas_src>

<mosaic_0001>
module attributes {stable_mosaic.version = 11 : i64} {
  func.func @qproc_kernel(%arg0: i32, %arg1: memref<1xi32, #tpu.memory_space<smem>>, %arg2: memref<8x16x128xbf16, #tpu.memory_space<vmem>>, %arg3: memref<128x768xbf16, #tpu.memory_space<vmem>>, %arg4: memref<1x384xf32, #tpu.memory_space<vmem>>, %arg5: memref<128x512xbf16, #tpu.memory_space<vmem>>, %arg6: memref<1x512xf32, #tpu.memory_space<vmem>>, %arg7: memref<128x512xbf16, #tpu.memory_space<vmem>>, %arg8: memref<16x1xi32, #tpu.memory_space<vmem>>, %arg9: memref<8x16x128xf32, #tpu.memory_space<vmem>>, %arg10: memref<8x16x128xf32, #tpu.memory_space<vmem>>, %arg11: memref<8x16x512xf32, #tpu.memory_space<vmem>>) attributes {dimension_semantics = [#tpu.dimension_semantics<parallel>], iteration_bounds = array<i64: 1>, scalar_prefetch = 1 : i64, scratch_operands = 1 : i64, tpu.core_type = #tpu.core_type<tc>, window_params = [{transform_indices = @transform_0, window_bounds = array<i64: 8, 16, 128>}, {pipeline_mode = #tpu.pipeline_mode<synchronous>, transform_indices = @transform_1, window_bounds = array<i64: 128, 768>}, {pipeline_mode = #tpu.pipeline_mode<synchronous>, transform_indices = @transform_2, window_bounds = array<i64: 1, 384>}, {pipeline_mode = #tpu.pipeline_mode<synchronous>, transform_indices = @transform_3, window_bounds = array<i64: 128, 512>}, {pipeline_mode = #tpu.pipeline_mode<synchronous>, transform_indices = @transform_4, window_bounds = array<i64: 1, 512>}, {pipeline_mode = #tpu.pipeline_mode<synchronous>, transform_indices = @transform_5, window_bounds = array<i64: 128, 512>}, {transform_indices = @transform_6, window_bounds = array<i64: 16, 1>}, {transform_indices = @transform_7, window_bounds = array<i64: 8, 16, 128>}, {transform_indices = @transform_8, window_bounds = array<i64: 8, 16, 128>}]} {
    %c0 = arith.constant 0 : index
    %c0_0 = arith.constant 0 : index
    %c0_1 = arith.constant 0 : index
    %0 = vector.load %arg2[%c0, %c0_0, %c0_1] : memref<8x16x128xbf16, #tpu.memory_space<vmem>>, vector<8x16x128xbf16>
    %1 = vector.shape_cast %0 : vector<8x16x128xbf16> to vector<128x128xbf16>
    %c0_2 = arith.constant 0 : index
    %c0_3 = arith.constant 0 : index
    %2 = vector.load %arg3[%c0_2, %c0_3] : memref<128x768xbf16, #tpu.memory_space<vmem>>, vector<128x768xbf16>
    %cst = arith.constant dense<0.000000e+00> : vector<128x768xf32>
    %3 = tpu.matmul %1, %2, %cst {dimension_numbers = #tpu.dot_dimension_numbers<[1], [0], [0], [1], [0, 0, 1, 1], [], []>} : vector<128x128xbf16>, vector<128x768xbf16>, vector<128x768xf32> -> vector<128x768xf32>
    %4 = vector.shape_cast %3 : vector<128x768xf32> to vector<8x16x768xf32>
    %c0_4 = arith.constant 0 : index
    %c0_5 = arith.constant 0 : index
    %5 = vector.load %arg4[%c0_4, %c0_5] : memref<1x384xf32, #tpu.memory_space<vmem>>, vector<1x384xf32>
    %6 = vector.extract_strided_slice %5 {offsets = [0, 0], sizes = [1, 128], strides = [1, 1]} : vector<1x384xf32> to vector<1x128xf32>
    %7 = vector.shape_cast %6 : vector<1x128xf32> to vector<1x1x128xf32>
    %8 = vector.extract_strided_slice %5 {offsets = [0, 128], sizes = [1, 128], strides = [1, 1]} : vector<1x384xf32> to vector<1x128xf32>
    %9 = vector.shape_cast %8 : vector<1x128xf32> to vector<1x1x128xf32>
    %10 = vector.extract_strided_slice %5 {offsets = [0, 256], sizes = [1, 128], strides = [1, 1]} : vector<1x384xf32> to vector<1x128xf32>
    %11 = vector.shape_cast %10 : vector<1x128xf32> to vector<1x1x128xf32>
    %12 = vector.extract_strided_slice %4 {offsets = [0, 0, 0], sizes = [8, 16, 128], strides = [1, 1, 1]} : vector<8x16x768xf32> to vector<8x16x128xf32>
    %13 = vector.broadcast %7 : vector<1x1x128xf32> to vector<8x16x128xf32>
    %14 = arith.addf %12, %13 : vector<8x16x128xf32>
    %15 = vector.extract_strided_slice %4 {offsets = [0, 0, 128], sizes = [8, 16, 128], strides = [1, 1, 1]} : vector<8x16x768xf32> to vector<8x16x128xf32>
    %16 = vector.broadcast %9 : vector<1x1x128xf32> to vector<8x16x128xf32>
    %17 = arith.addf %15, %16 : vector<8x16x128xf32>
    %18 = vector.extract_strided_slice %4 {offsets = [0, 0, 256], sizes = [8, 16, 128], strides = [1, 1, 1]} : vector<8x16x768xf32> to vector<8x16x128xf32>
    %19 = vector.broadcast %11 : vector<1x1x128xf32> to vector<8x16x128xf32>
    %20 = arith.addf %18, %19 : vector<8x16x128xf32>
    %cst_6 = arith.constant 0.000000e+00 : f32
    %21 = vector.broadcast %cst_6 : f32 to vector<1x16x128xf32>
    %22 = vector.extract_strided_slice %4 {offsets = [0, 0, 384], sizes = [7, 16, 128], strides = [1, 1, 1]} : vector<8x16x768xf32> to vector<7x16x128xf32>
    %23 = tpu.concatenate %21, %22 in 0 : vector<1x16x128xf32>, vector<7x16x128xf32> -> vector<8x16x128xf32>
    %24 = arith.addf %17, %23 : vector<8x16x128xf32>
    %25 = vector.extract_strided_slice %4 {offsets = [0, 0, 512], sizes = [7, 16, 128], strides = [1, 1, 1]} : vector<8x16x768xf32> to vector<7x16x128xf32>
    %26 = tpu.concatenate %21, %25 in 0 : vector<1x16x128xf32>, vector<7x16x128xf32> -> vector<8x16x128xf32>
    %27 = arith.addf %20, %26 : vector<8x16x128xf32>
    %28 = vector.extract_strided_slice %4 {offsets = [1, 0, 640], sizes = [7, 16, 128], strides = [1, 1, 1]} : vector<8x16x768xf32> to vector<7x16x128xf32>
    %29 = tpu.concatenate %28, %21 in 0 : vector<7x16x128xf32>, vector<1x16x128xf32> -> vector<8x16x128xf32>
    %30 = arith.addf %27, %29 : vector<8x16x128xf32>
    %31 = arith.maximumf %14, %24 : vector<8x16x128xf32>
    %32 = arith.maximumf %31, %30 : vector<8x16x128xf32>
    %33 = math.tanh %32 : vector<8x16x128xf32>
    %c0_7 = arith.constant 0 : index
    %c0_8 = arith.constant 0 : index
    %c0_9 = arith.constant 0 : index
    %34 = vector.load %arg9[%c0_7, %c0_8, %c0_9] : memref<8x16x128xf32, #tpu.memory_space<vmem>>, vector<8x16x128xf32>
    tpu.vector_store %arg9[%c0_7, %c0_8, %c0_9], %33 {strides = array<i32>} : memref<8x16x128xf32, #tpu.memory_space<vmem>>, vector<8x16x128xf32>,
    %35 = vector.shape_cast %33 : vector<8x16x128xf32> to vector<128x128xf32>
    %36 = arith.truncf %35 : vector<128x128xf32> to vector<128x128xbf16>
    %c0_10 = arith.constant 0 : index
    %c0_11 = arith.constant 0 : index
    %37 = vector.load %arg5[%c0_10, %c0_11] : memref<128x512xbf16, #tpu.memory_space<vmem>>, vector<128x512xbf16>
    %cst_12 = arith.constant dense<0.000000e+00> : vector<128x512xf32>
    %38 = tpu.matmul %36, %37, %cst_12 {dimension_numbers = #tpu.dot_dimension_numbers<[1], [0], [0], [1], [0, 0, 1, 1], [], []>} : vector<128x128xbf16>, vector<128x512xbf16>, vector<128x512xf32> -> vector<128x512xf32>
    %c0_13 = arith.constant 0 : index
    %c0_14 = arith.constant 0 : index
    %39 = vector.load %arg6[%c0_13, %c0_14] : memref<1x512xf32, #tpu.memory_space<vmem>>, vector<1x512xf32>
    %40 = vector.broadcast %39 : vector<1x512xf32> to vector<128x512xf32>
    %41 = arith.addf %38, %40 : vector<128x512xf32>
    %42 = vector.shape_cast %41 : vector<128x512xf32> to vector<8x16x512xf32>
    %c0_15 = arith.constant 0 : index
    %c0_16 = arith.constant 0 : index
    %c0_17 = arith.constant 0 : index
    %43 = vector.load %arg11[%c0_15, %c0_16, %c0_17] : memref<8x16x512xf32, #tpu.memory_space<vmem>>, vector<8x16x512xf32>
    tpu.vector_store %arg11[%c0_15, %c0_16, %c0_17], %42 {strides = array<i32>} : memref<8x16x512xf32, #tpu.memory_space<vmem>>, vector<8x16x512xf32>,
    %c0_18 = arith.constant 0 : index
    %c0_19 = arith.constant 0 : index
    %44 = vector.load %arg8[%c0_18, %c0_19] : memref<16x1xi32, #tpu.memory_space<vmem>>, vector<16x1xi32>
    %45 = arith.index_cast %arg0 : i32 to index
    %46 = memref.load %arg1[%45] : memref<1xi32, #tpu.memory_space<smem>>
    %c8_i32 = arith.constant 8 : i32
    %47 = arith.minsi %46, %c8_i32 : i32
    %cst_20 = arith.constant 0.000000e+00 : f32
    %48 = vector.broadcast %cst_20 : f32 to vector<16x128xf32>
    %cst_21 = arith.constant 0.000000e+00 : f32
    %49 = vector.broadcast %cst_21 : f32 to vector<16x128xf32>
    %c0_i32 = arith.constant 0 : i32
    %50 = arith.subi %47, %c0_i32 : i32
    %51 = arith.addi %c0_i32, %50 : i32
    %c1_i32 = arith.constant 1 : i32
    %52:2 = scf.for %arg12 = %c0_i32 to %51 step %c1_i32 iter_args(%arg13 = %48, %arg14 = %49) -> (vector<16x128xf32>, vector<16x128xf32>)  : i32 {
      %56 = arith.index_cast %arg12 : i32 to index
      %c0_25 = arith.constant 0 : index
      %c0_26 = arith.constant 0 : index
      %57 = vector.load %arg11[%56, %c0_25, %c0_26] : memref<8x16x512xf32, #tpu.memory_space<vmem>>, vector<1x16x512xf32>
      %58 = vector.shape_cast %57 : vector<1x16x512xf32> to vector<16x512xf32>
      %59 = arith.truncf %arg13 : vector<16x128xf32> to vector<16x128xbf16>
      %c0_27 = arith.constant 0 : index
      %c0_28 = arith.constant 0 : index
      %60 = vector.load %arg7[%c0_27, %c0_28] : memref<128x512xbf16, #tpu.memory_space<vmem>>, vector<128x512xbf16>
      %cst_29 = arith.constant dense<0.000000e+00> : vector<16x512xf32>
      %61 = tpu.matmul %59, %60, %cst_29 {dimension_numbers = #tpu.dot_dimension_numbers<[1], [0], [0], [1], [0, 0, 1, 1], [], []>} : vector<16x128xbf16>, vector<128x512xbf16>, vector<16x512xf32> -> vector<16x512xf32>
      %62 = arith.addf %58, %61 : vector<16x512xf32>
      %63 = vector.extract_strided_slice %62 {offsets = [0, 0], sizes = [16, 128], strides = [1, 1]} : vector<16x512xf32> to vector<16x128xf32>
      %64 = arith.negf %63 : vector<16x128xf32>
      %65 = math.exp %64 : vector<16x128xf32>
      %cst_30 = arith.constant 1.000000e+00 : f32
      %66 = vector.broadcast %cst_30 : f32 to vector<16x128xf32>
      %67 = arith.addf %66, %65 : vector<16x128xf32>
      %68 = arith.divf %66, %67 : vector<16x128xf32>
      %69 = vector.extract_strided_slice %62 {offsets = [0, 128], sizes = [16, 128], strides = [1, 1]} : vector<16x512xf32> to vector<16x128xf32>
      %70 = arith.negf %69 : vector<16x128xf32>
      %71 = math.exp %70 : vector<16x128xf32>
      %cst_31 = arith.constant 1.000000e+00 : f32
      %72 = vector.broadcast %cst_31 : f32 to vector<16x128xf32>
      %73 = arith.addf %72, %71 : vector<16x128xf32>
      %74 = arith.divf %72, %73 : vector<16x128xf32>
      %75 = vector.extract_strided_slice %62 {offsets = [0, 256], sizes = [16, 128], strides = [1, 1]} : vector<16x512xf32> to vector<16x128xf32>
      %76 = math.tanh %75 : vector<16x128xf32>
      %77 = vector.extract_strided_slice %62 {offsets = [0, 384], sizes = [16, 128], strides = [1, 1]} : vector<16x512xf32> to vector<16x128xf32>
      %78 = arith.negf %77 : vector<16x128xf32>
      %79 = math.exp %78 : vector<16x128xf32>
      %cst_32 = arith.constant 1.000000e+00 : f32
      %80 = vector.broadcast %cst_32 : f32 to vector<16x128xf32>
      %81 = arith.addf %80, %79 : vector<16x128xf32>
      %82 = arith.divf %80, %81 : vector<16x128xf32>
      %83 = arith.mulf %74, %arg14 : vector<16x128xf32>
      %84 = arith.mulf %68, %76 : vector<16x128xf32>
      %85 = arith.addf %83, %84 : vector<16x128xf32>
      %86 = math.tanh %85 : vector<16x128xf32>
      %87 = arith.mulf %82, %86 : vector<16x128xf32>
      %88 = vector.broadcast %arg12 : i32 to vector<16x1xi32>
      %89 = arith.cmpi slt, %88, %44 : vector<16x1xi32>
      %cst_33 = arith.constant 0.000000e+00 : f32
      %90 = vector.shape_cast %89 : vector<16x1xi1> to vector<16x1xi1>
      %91 = vector.broadcast %90 : vector<16x1xi1> to vector<16x128xi1>
      %92 = vector.broadcast %cst_33 : f32 to vector<16x128xf32>
      %93 = arith.select %91, %87, %92 : vector<16x128xi1>, vector<16x128xf32>
      %94 = arith.index_cast %arg12 : i32 to index
      %c0_34 = arith.constant 0 : index
      %c0_35 = arith.constant 0 : index
      %95 = vector.load %arg10[%94, %c0_34, %c0_35] : memref<8x16x128xf32, #tpu.memory_space<vmem>>, vector<1x16x128xf32>
      %96 = vector.shape_cast %95 : vector<1x16x128xf32> to vector<16x128xf32>
      %97 = vector.shape_cast %93 : vector<16x128xf32> to vector<1x16x128xf32>
      tpu.vector_store %arg10[%94, %c0_34, %c0_35], %97 {strides = array<i32>} : memref<8x16x128xf32, #tpu.memory_space<vmem>>, vector<1x16x128xf32>,
      scf.yield %87, %85 : vector<16x128xf32>, vector<16x128xf32>
    }
    %c8_i32_22 = arith.constant 8 : i32
    %c0_i32_23 = arith.constant 0 : i32
    %53 = arith.subi %c8_i32_22, %47 : i32
    %54 = arith.addi %47, %53 : i32
    %c1_i32_24 = arith.constant 1 : i32
    %55 = scf.for %arg12 = %47 to %54 step %c1_i32_24 iter_args(%arg13 = %c0_i32_23) -> (i32)  : i32 {
      %cst_25 = arith.constant 0.000000e+00 : f32
      %56 = vector.broadcast %cst_25 : f32 to vector<16x128xf32>
      %57 = arith.index_cast %arg12 : i32 to index
      %c0_26 = arith.constant 0 : index
      %c0_27 = arith.constant 0 : index
      %58 = vector.load %arg10[%57, %c0_26, %c0_27] : memref<8x16x128xf32, #tpu.memory_space<vmem>>, vector<1x16x128xf32>
      %59 = vector.shape_cast %58 : vector<1x16x128xf32> to vector<16x128xf32>
      %60 = vector.shape_cast %56 : vector<16x128xf32> to vector<1x16x128xf32>
      tpu.vector_store %arg10[%57, %c0_26, %c0_27], %60 {strides = array<i32>} : memref<8x16x128xf32, #tpu.memory_space<vmem>>, vector<1x16x128xf32>,
      %c0_i32_28 = arith.constant 0 : i32
      scf.yield %c0_i32_28 : i32
    }
    return
  }
  func.func @transform_0(%arg0: i32, %arg1: memref<1xi32, #tpu.memory_space<smem>>) -> (i32, i32, i32) {
    %c0_i32 = arith.constant 0 : i32
    %c0_i32_0 = arith.constant 0 : i32
    %c0_i32_1 = arith.constant 0 : i32
    return %c0_i32, %arg0, %c0_i32_0 : i32, i32, i32
  }
  func.func @transform_1(%arg0: i32, %arg1: memref<1xi32, #tpu.memory_space<smem>>) -> (i32, i32) {
    %c0_i32 = arith.constant 0 : i32
    %c0_i32_0 = arith.constant 0 : i32
    %c0_i32_1 = arith.constant 0 : i32
    return %c0_i32, %c0_i32_0 : i32, i32
  }
  func.func @transform_2(%arg0: i32, %arg1: memref<1xi32, #tpu.memory_space<smem>>) -> (i32, i32) {
    %c0_i32 = arith.constant 0 : i32
    %c0_i32_0 = arith.constant 0 : i32
    %c0_i32_1 = arith.constant 0 : i32
    return %c0_i32, %c0_i32_0 : i32, i32
  }
  func.func @transform_3(%arg0: i32, %arg1: memref<1xi32, #tpu.memory_space<smem>>) -> (i32, i32) {
    %c0_i32 = arith.constant 0 : i32
    %c0_i32_0 = arith.constant 0 : i32
    %c0_i32_1 = arith.constant 0 : i32
    return %c0_i32, %c0_i32_0 : i32, i32
  }
  func.func @transform_4(%arg0: i32, %arg1: memref<1xi32, #tpu.memory_space<smem>>) -> (i32, i32) {
    %c0_i32 = arith.constant 0 : i32
    %c0_i32_0 = arith.constant 0 : i32
    %c0_i32_1 = arith.constant 0 : i32
    return %c0_i32, %c0_i32_0 : i32, i32
  }
  func.func @transform_5(%arg0: i32, %arg1: memref<1xi32, #tpu.memory_space<smem>>) -> (i32, i32) {
    %c0_i32 = arith.constant 0 : i32
    %c0_i32_0 = arith.constant 0 : i32
    %c0_i32_1 = arith.constant 0 : i32
    return %c0_i32, %c0_i32_0 : i32, i32
  }
  func.func @transform_6(%arg0: i32, %arg1: memref<1xi32, #tpu.memory_space<smem>>) -> (i32, i32) {
    %c0_i32 = arith.constant 0 : i32
    %c0_i32_0 = arith.constant 0 : i32
    return %arg0, %c0_i32 : i32, i32
  }
  func.func @transform_7(%arg0: i32, %arg1: memref<1xi32, #tpu.memory_space<smem>>) -> (i32, i32, i32) {
    %c0_i32 = arith.constant 0 : i32
    %c0_i32_0 = arith.constant 0 : i32
    %c0_i32_1 = arith.constant 0 : i32
    return %c0_i32, %arg0, %c0_i32_0 : i32, i32, i32
  }
  func.func @transform_8(%arg0: i32, %arg1: memref<1xi32, #tpu.memory_space<smem>>) -> (i32, i32, i32) {
    %c0_i32 = arith.constant 0 : i32
    %c0_i32_0 = arith.constant 0 : i32
    %c0_i32_1 = arith.constant 0 : i32
    return %c0_i32, %arg0, %c0_i32_0 : i32, i32, i32
  }
}

</mosaic_0001>

<llo_original>
// kernel: question_processor_forward.1
$region0: #{question_processor_forward.1}
  #allocation0 [shape = 'u32[]', space=smem, size = 0x4, offset = 0x4, fixed_abs, tag = 'smem constant byte address 0x4 - core index']
  #allocation1 [shape = 'u32[144,128]{1,0:T(1,128)}', space=vmem, size = 0x12000, scoped, tag = 'internal scratch']
  #allocation2 [shape = 'f32[8,16,512]{2,1,0:T(8,128)}', space=vmem, size = 0x40000, scoped, tag = 'scratch operand']
  #allocation3 [shape = 's32[1]{0}', space=sflag, size = 0x4, scoped, tag = 'scoped memory for question_processor_forward.1']
  #allocation4 [shape = 's32[1]{0:T(128)S(6)}', space=smem, size = 0x200, scoped, tag = 'prefetched SMEM operand 0']
  %s0 = inlined_call_operand.<no memory space> [shape: s32[1], index: 0, kind: input, shape index: {}]
  %s1 = inlined_call_operand.vmem [shape: bf16[8,16,128], index: 1, kind: input, shape index: {}]
  %s2 = inlined_call_operand.vmem [shape: bf16[128,768], index: 2, kind: input, shape index: {}]
  %s3 = inlined_call_operand.vmem [shape: f32[1,384], index: 3, kind: input, shape index: {}]
  %s4 = inlined_call_operand.vmem [shape: bf16[128,512], index: 4, kind: input, shape index: {}]
  %s5 = inlined_call_operand.vmem [shape: f32[1,512], index: 5, kind: input, shape index: {}]
  %s6 = inlined_call_operand.vmem [shape: bf16[128,512], index: 6, kind: input, shape index: {}]
  %s7 = inlined_call_operand.vmem [shape: s32[16,1], index: 7, kind: input, shape index: {}]
  %s8 = inlined_call_operand.vmem [shape: f32[8,16,128], index: 8, kind: output, shape index: {0}]
  %s9 = inlined_call_operand.vmem [shape: f32[8,16,128], index: 9, kind: output, shape index: {1}]
  %10 = xla_tuple %s8, %s9
  %s11 = sld [smem:[#allocation0]]
  $region60: #{question_processor_forward.1} parent=0
    _
  %s13 = ssub.s32 1, %s11
  %s14 = scalar_select 0, %s13, %s11
  %15 = sst [smem:[#allocation4]] %s0
  // Predicated region
  $region2: #{question_processor_forward.1} parent=0 // pred_check
    _
  $region3: #{question_processor_forward.1} parent=0 // pred_check_branch
    %17 = sbr.rel (0) target = $region5
  $region4: #{question_processor_forward.1} parent=0 // pred_region
    _
  $region5: #{question_processor_forward.1} parent=0 // pred_fallthru
    _
  // Predicated region
  $region6: #{question_processor_forward.1} parent=0 // pred_check
    _
  $region7: #{question_processor_forward.1} parent=0 // pred_check_branch
    %19 = sbr.rel (0) target = $region9
  $region8: #{question_processor_forward.1} parent=0 // pred_region
    _
  $region9: #{question_processor_forward.1} parent=0 // pred_fallthru
    _
  // Predicated region
  $region10: #{question_processor_forward.1} parent=0 // pred_check
    _
  $region11: #{question_processor_forward.1} parent=0 // pred_check_branch
    %21 = sbr.rel (0) target = $region13
  $region12: #{question_processor_forward.1} parent=0 // pred_region
    _
  $region13: #{question_processor_forward.1} parent=0 // pred_fallthru
    _
  // Predicated region
  $region14: #{question_processor_forward.1} parent=0 // pred_check
    _
  $region15: #{question_processor_forward.1} parent=0 // pred_check_branch
    %23 = sbr.rel (0) target = $region17
  $region16: #{question_processor_forward.1} parent=0 // pred_region
    _
  $region17: #{question_processor_forward.1} parent=0 // pred_fallthru
    _
  // Predicated region
  $region18: #{question_processor_forward.1} parent=0 // pred_check
    _
  $region19: #{question_processor_forward.1} parent=0 // pred_check_branch
    %25 = sbr.rel (0) target = $region21
  $region20: #{question_processor_forward.1} parent=0 // pred_region
    _
  $region21: #{question_processor_forward.1} parent=0 // pred_fallthru
    _
  // Predicated region
  $region22: #{question_processor_forward.1} parent=0 // pred_check
    _
  $region23: #{question_processor_forward.1} parent=0 // pred_check_branch
    %27 = sbr.rel (0) target = $region25
  $region24: #{question_processor_forward.1} parent=0 // pred_region
    _
  $region25: #{question_processor_forward.1} parent=0 // pred_fallthru
    _
  // Predicated region
  $region26: #{question_processor_forward.1} parent=0 // pred_check
    _
  $region27: #{question_processor_forward.1} parent=0 // pred_check_branch
    %29 = sbr.rel (0) target = $region29
  $region28: #{question_processor_forward.1} parent=0 // pred_region
    _
  $region29: #{question_processor_forward.1} parent=0 // pred_fallthru
    _
  %v31 = vld [vmem:[%s1] sm:$0xf]
  %v32 = vld [vmem:[%s1 + $0x4] sm:$0xf]
  %v33 = vld [vmem:[%s1 + $0x8] sm:$0xf]
  %v34 = vld [vmem:[%s1 + $0xc] sm:$0xf]
  %v35 = vld [vmem:[%s1 + $0x10] sm:$0xf]
  %v36 = vld [vmem:[%s1 + $0x14] sm:$0xf]
  %v37 = vld [vmem:[%s1 + $0x18] sm:$0xf]
  %v38 = vld [vmem:[%s1 + $0x1c] sm:$0xf]
  %v39 = vld [vmem:[%s1 + $0x20] sm:$0xf]
  %v40 = vld [vmem:[%s1 + $0x24] sm:$0xf]
  %v41 = vld [vmem:[%s1 + $0x28] sm:$0xf]
  %v42 = vld [vmem:[%s1 + $0x2c] sm:$0xf]
  %v43 = vld [vmem:[%s1 + $0x30] sm:$0xf]
  %v44 = vld [vmem:[%s1 + $0x34] sm:$0xf]
  %v45 = vld [vmem:[%s1 + $0x38] sm:$0xf]
  %v46 = vld [vmem:[%s1 + $0x3c] sm:$0xf]
  %v47 = vld [vmem:[%s2] sm:$0xff]
  %v48 = vld [vmem:[%s2 + $0x8] sm:$0xff]
  %v49 = vld [vmem:[%s2 + $0x10] sm:$0xff]
  %v50 = vld [vmem:[%s2 + $0x18] sm:$0xff]
  %v51 = vld [vmem:[%s2 + $0x20] sm:$0xff]
  %v52 = vld [vmem:[%s2 + $0x28] sm:$0xff]
  %v53 = vld [vmem:[%s2 + $0x30] sm:$0xff]
  %v54 = vld [vmem:[%s2 + $0x38] sm:$0xff]
  %v55 = vld [vmem:[%s2 + $0x40] sm:$0xff]
  %v56 = vld [vmem:[%s2 + $0x48] sm:$0xff]
  %v57 = vld [vmem:[%s2 + $0x50] sm:$0xff]
  %v58 = vld [vmem:[%s2 + $0x58] sm:$0xff]
  %v59 = vld [vmem:[%s2 + $0x60] sm:$0xff]
  %v60 = vld [vmem:[%s2 + $0x68] sm:$0xff]
  %v61 = vld [vmem:[%s2 + $0x70] sm:$0xff]
  %v62 = vld [vmem:[%s2 + $0x78] sm:$0xff]
  %v63 = vld [vmem:[%s2 + $0x80] sm:$0xff]
  %v64 = vld [vmem:[%s2 + $0x88] sm:$0xff]
  %v65 = vld [vmem:[%s2 + $0x90] sm:$0xff]
  %v66 = vld [vmem:[%s2 + $0x98] sm:$0xff]
  %v67 = vld [vmem:[%s2 + $0xa0] sm:$0xff]
  %v68 = vld [vmem:[%s2 + $0xa8] sm:$0xff]
  %v69 = vld [vmem:[%s2 + $0xb0] sm:$0xff]
  %v70 = vld [vmem:[%s2 + $0xb8] sm:$0xff]
  %v71 = vld [vmem:[%s2 + $0xc0] sm:$0xff]
  %v72 = vld [vmem:[%s2 + $0xc8] sm:$0xff]
  %v73 = vld [vmem:[%s2 + $0xd0] sm:$0xff]
  %v74 = vld [vmem:[%s2 + $0xd8] sm:$0xff]
  %v75 = vld [vmem:[%s2 + $0xe0] sm:$0xff]
  %v76 = vld [vmem:[%s2 + $0xe8] sm:$0xff]
  %v77 = vld [vmem:[%s2 + $0xf0] sm:$0xff]
  %v78 = vld [vmem:[%s2 + $0xf8] sm:$0xff]
  %v79 = vld [vmem:[%s2 + $0x100] sm:$0xff]
  %v80 = vld [vmem:[%s2 + $0x108] sm:$0xff]
  %v81 = vld [vmem:[%s2 + $0x110] sm:$0xff]
  %v82 = vld [vmem:[%s2 + $0x118] sm:$0xff]
  %v83 = vld [vmem:[%s2 + $0x120] sm:$0xff]
  %v84 = vld [vmem:[%s2 + $0x128] sm:$0xff]
  %v85 = vld [vmem:[%s2 + $0x130] sm:$0xff]
  %v86 = vld [vmem:[%s2 + $0x138] sm:$0xff]
  %v87 = vld [vmem:[%s2 + $0x140] sm:$0xff]
  %v88 = vld [vmem:[%s2 + $0x148] sm:$0xff]
  %v89 = vld [vmem:[%s2 + $0x150] sm:$0xff]
  %v90 = vld [vmem:[%s2 + $0x158] sm:$0xff]
  %v91 = vld [vmem:[%s2 + $0x160] sm:$0xff]
  %v92 = vld [vmem:[%s2 + $0x168] sm:$0xff]
  %v93 = vld [vmem:[%s2 + $0x170] sm:$0xff]
  %v94 = vld [vmem:[%s2 + $0x178] sm:$0xff]
  %v111 = vunpack.c.l.b16 %v31
  %v112 = vunpack.c.l.b16 %v32
  %v113 = vunpack.c.l.b16 %v33
  %v114 = vunpack.c.l.b16 %v34
  %v115 = vunpack.c.l.b16 %v35
  %v116 = vunpack.c.l.b16 %v36
  %v117 = vunpack.c.l.b16 %v37
  %v118 = vunpack.c.l.b16 %v38
  %v119 = vunpack.c.l.b16 %v39
  %v120 = vunpack.c.l.b16 %v40
  %v121 = vunpack.c.l.b16 %v41
  %v122 = vunpack.c.l.b16 %v42
  %v123 = vunpack.c.l.b16 %v43
  %v124 = vunpack.c.l.b16 %v44
  %v125 = vunpack.c.l.b16 %v45
  %v126 = vunpack.c.l.b16 %v46
  %v127 = vpack.c.b16 %v112, %v111
  %v128 = vpack.c.b16 %v114, %v113
  %v129 = vpack.c.b16 %v116, %v115
  %v130 = vpack.c.b16 %v118, %v117
  %v131 = vpack.c.b16 %v120, %v119
  %v132 = vpack.c.b16 %v122, %v121
  %v133 = vpack.c.b16 %v124, %v123
  %v134 = vpack.c.b16 %v126, %v125
  %v191 = vunpack.c.l.b16 %v47
  %v192 = vunpack.c.h.b16 %v47
  %v193 = vunpack.c.l.b16 %v48
  %v194 = vunpack.c.h.b16 %v48
  %v195 = vunpack.c.l.b16 %v49
  %v196 = vunpack.c.h.b16 %v49
  %v197 = vunpack.c.l.b16 %v50
  %v198 = vunpack.c.h.b16 %v50
  %v199 = vunpack.c.l.b16 %v51
  %v200 = vunpack.c.h.b16 %v51
  %v201 = vunpack.c.l.b16 %v52
  %v202 = vunpack.c.h.b16 %v52
  %v203 = vunpack.c.l.b16 %v53
  %v204 = vunpack.c.h.b16 %v53
  %v205 = vunpack.c.l.b16 %v54
  %v206 = vunpack.c.h.b16 %v54
  %v207 = vunpack.c.l.b16 %v55
  %v208 = vunpack.c.h.b16 %v55
  %v209 = vunpack.c.l.b16 %v56
  %v210 = vunpack.c.h.b16 %v56
  %v211 = vunpack.c.l.b16 %v57
  %v212 = vunpack.c.h.b16 %v57
  %v213 = vunpack.c.l.b16 %v58
  %v214 = vunpack.c.h.b16 %v58
  %v215 = vunpack.c.l.b16 %v59
  %v216 = vunpack.c.h.b16 %v59
  %v217 = vunpack.c.l.b16 %v60
  %v218 = vunpack.c.h.b16 %v60
  %v219 = vunpack.c.l.b16 %v61
  %v220 = vunpack.c.h.b16 %v61
  %v221 = vunpack.c.l.b16 %v62
  %v222 = vunpack.c.h.b16 %v62
  %v223 = vunpack.c.l.b16 %v63
  %v224 = vunpack.c.h.b16 %v63
  %v225 = vunpack.c.l.b16 %v64
  %v226 = vunpack.c.h.b16 %v64
  %v227 = vunpack.c.l.b16 %v65
  %v228 = vunpack.c.h.b16 %v65
  %v229 = vunpack.c.l.b16 %v66
  %v230 = vunpack.c.h.b16 %v66
  %v231 = vunpack.c.l.b16 %v67
  %v232 = vunpack.c.h.b16 %v67
  %v233 = vunpack.c.l.b16 %v68
  %v234 = vunpack.c.h.b16 %v68
  %v235 = vunpack.c.l.b16 %v69
  %v236 = vunpack.c.h.b16 %v69
  %v237 = vunpack.c.l.b16 %v70
  %v238 = vunpack.c.h.b16 %v70
  %v239 = vunpack.c.l.b16 %v71
  %v240 = vunpack.c.h.b16 %v71
  %v241 = vunpack.c.l.b16 %v72
  %v242 = vunpack.c.h.b16 %v72
  %v243 = vunpack.c.l.b16 %v73
  %v244 = vunpack.c.h.b16 %v73
  %v245 = vunpack.c.l.b16 %v74
  %v246 = vunpack.c.h.b16 %v74
  %v247 = vunpack.c.l.b16 %v75
  %v248 = vunpack.c.h.b16 %v75
  %v249 = vunpack.c.l.b16 %v76
  %v250 = vunpack.c.h.b16 %v76
  %v251 = vunpack.c.l.b16 %v77
  %v252 = vunpack.c.h.b16 %v77
  %v253 = vunpack.c.l.b16 %v78
  %v254 = vunpack.c.h.b16 %v78
  %v255 = vunpack.c.l.b16 %v79
  %v256 = vunpack.c.h.b16 %v79
  %v257 = vunpack.c.l.b16 %v80
  %v258 = vunpack.c.h.b16 %v80
  %v259 = vunpack.c.l.b16 %v81
  %v260 = vunpack.c.h.b16 %v81
  %v261 = vunpack.c.l.b16 %v82
  %v262 = vunpack.c.h.b16 %v82
  %v263 = vunpack.c.l.b16 %v83
  %v264 = vunpack.c.h.b16 %v83
  %v265 = vunpack.c.l.b16 %v84
  %v266 = vunpack.c.h.b16 %v84
  %v267 = vunpack.c.l.b16 %v85
  %v268 = vunpack.c.h.b16 %v85
  %v269 = vunpack.c.l.b16 %v86
  %v270 = vunpack.c.h.b16 %v86
  %v271 = vunpack.c.l.b16 %v87
  %v272 = vunpack.c.h.b16 %v87
  %v273 = vunpack.c.l.b16 %v88
  %v274 = vunpack.c.h.b16 %v88
  %v275 = vunpack.c.l.b16 %v89
  %v276 = vunpack.c.h.b16 %v89
  %v277 = vunpack.c.l.b16 %v90
  %v278 = vunpack.c.h.b16 %v90
  %v279 = vunpack.c.l.b16 %v91
  %v280 = vunpack.c.h.b16 %v91
  %v281 = vunpack.c.l.b16 %v92
  %v282 = vunpack.c.h.b16 %v92
  %v283 = vunpack.c.l.b16 %v93
  %v284 = vunpack.c.h.b16 %v93
  %v285 = vunpack.c.l.b16 %v94
  %v286 = vunpack.c.h.b16 %v94
  %v287 = vpack.c.b16 %v197, %v191
  %v288 = vpack.c.b16 %v198, %v192
  %v289 = vpack.c.b16 %v199, %v193
  %v290 = vpack.c.b16 %v200, %v194
  %v291 = vpack.c.b16 %v201, %v195
  %v292 = vpack.c.b16 %v202, %v196
  %v293 = vpack.c.b16 %v209, %v203
  %v294 = vpack.c.b16 %v210, %v204
  %v295 = vpack.c.b16 %v211, %v205
  %v296 = vpack.c.b16 %v212, %v206
  %v297 = vpack.c.b16 %v213, %v207
  %v298 = vpack.c.b16 %v214, %v208
  %v299 = vpack.c.b16 %v221, %v215
  %v300 = vpack.c.b16 %v222, %v216
  %v301 = vpack.c.b16 %v223, %v217
  %v302 = vpack.c.b16 %v224, %v218
  %v303 = vpack.c.b16 %v225, %v219
  %v304 = vpack.c.b16 %v226, %v220
  %v305 = vpack.c.b16 %v233, %v227
  %v306 = vpack.c.b16 %v234, %v228
  %v307 = vpack.c.b16 %v235, %v229
  %v308 = vpack.c.b16 %v236, %v230
  %v309 = vpack.c.b16 %v237, %v231
  %v310 = vpack.c.b16 %v238, %v232
  %v311 = vpack.c.b16 %v245, %v239
  %v312 = vpack.c.b16 %v246, %v240
  %v313 = vpack.c.b16 %v247, %v241
  %v314 = vpack.c.b16 %v248, %v242
  %v315 = vpack.c.b16 %v249, %v243
  %v316 = vpack.c.b16 %v250, %v244
  %v317 = vpack.c.b16 %v257, %v251
  %v318 = vpack.c.b16 %v258, %v252
  %v319 = vpack.c.b16 %v259, %v253
  %v320 = vpack.c.b16 %v260, %v254
  %v321 = vpack.c.b16 %v261, %v255
  %v322 = vpack.c.b16 %v262, %v256
  %v323 = vpack.c.b16 %v269, %v263
  %v324 = vpack.c.b16 %v270, %v264
  %v325 = vpack.c.b16 %v271, %v265
  %v326 = vpack.c.b16 %v272, %v266
  %v327 = vpack.c.b16 %v273, %v267
  %v328 = vpack.c.b16 %v274, %v268
  %v329 = vpack.c.b16 %v281, %v275
  %v330 = vpack.c.b16 %v282, %v276
  %v331 = vpack.c.b16 %v283, %v277
  %v332 = vpack.c.b16 %v284, %v278
  %v333 = vpack.c.b16 %v285, %v279
  %v334 = vpack.c.b16 %v286, %v280
  %383 = vmatprep.subr.bf16.mxu0 %v330
  %384 = vmatpush1.bf16.msra.mxu0 %v329
  %385 = vmatprep.subr.bf16.mxu0 %v324
  %386 = vmatpush1.bf16.msra.mxu0 %v323
  %387 = vmatprep.subr.bf16.mxu0 %v318
  %388 = vmatpush1.bf16.msra.mxu0 %v317
  %389 = vmatprep.subr.bf16.mxu0 %v312
  %390 = vmatpush1.bf16.msra.mxu0 %v311
  %391 = vmatprep.subr.bf16.mxu0 %v306
  %392 = vmatpush1.bf16.msra.mxu0 %v305
  %393 = vmatprep.subr.bf16.mxu0 %v300
  %394 = vmatpush1.bf16.msra.mxu0 %v299
  %395 = vmatprep.subr.bf16.mxu0 %v294
  %396 = vmatpush1.bf16.msra.mxu0 %v293
  %397 = vmatprep.subr.bf16.mxu0 %v288
  %398 = vmatpush1.bf16.msra.mxu0 %v287
  %399 = vmatprep.subr.bf16.mxu0 0
  %400 = vmatpush2.bf16.msra.mxu0 0
  %401 = vmatprep.subr.bf16.mxu0 0
  %402 = vmatpush2.bf16.msra.mxu0 0
  %403 = vmatprep.subr.bf16.mxu0 0
  %404 = vmatpush2.bf16.msra.mxu0 0
  %405 = vmatprep.subr.bf16.mxu0 0
  %406 = vmatpush2.bf16.msra.mxu0 0
  %407 = vmatprep.subr.bf16.mxu0 0
  %408 = vmatpush2.bf16.msra.mxu0 0
  %409 = vmatprep.subr.bf16.mxu0 0
  %410 = vmatpush2.bf16.msra.mxu0 0
  %411 = vmatprep.subr.bf16.mxu0 0
  %412 = vmatpush2.bf16.msra.mxu0 0
  %413 = vmatprep.subr.bf16.mxu0 0
  %414 = vmatpush2.bf16.msra.mxu0 0
  %415 = vmatprep.mubr.bf16.mxu0 0
  %416 = vmatmul.mubr.bf16.gmra.mxu0 %v127
  %v417 = vpop.f32.mrf.mxu0
  %v418 = vadd.f32 0.0, %v417
  %v419 = vpop.f32.mrf.mxu0
  %v420 = vadd.f32 0.0, %v419
  %v421 = vpop.f32.mrf.mxu0
  %v422 = vadd.f32 0.0, %v421
  %v423 = vpop.f32.mrf.mxu0
  %v424 = vadd.f32 0.0, %v423
  %425 = vmatprep.mubr.bf16.mxu0 0
  %426 = vmatmul.mubr.bf16.gmra.mxu0 %v128
  %v427 = vpop.f32.mrf.mxu0
  %v428 = vadd.f32 0.0, %v427
  %v429 = vpop.f32.mrf.mxu0
  %v430 = vadd.f32 0.0, %v429
  %v431 = vpop.f32.mrf.mxu0
  %v432 = vadd.f32 0.0, %v431
  %v433 = vpop.f32.mrf.mxu0
  %v434 = vadd.f32 0.0, %v433
  %435 = vmatprep.mubr.bf16.mxu0 0
  %436 = vmatmul.mubr.bf16.gmra.mxu0 %v129
  %v437 = vpop.f32.mrf.mxu0
  %v438 = vadd.f32 0.0, %v437
  %v439 = vpop.f32.mrf.mxu0
  %v440 = vadd.f32 0.0, %v439
  %v441 = vpop.f32.mrf.mxu0
  %v442 = vadd.f32 0.0, %v441
  %v443 = vpop.f32.mrf.mxu0
  %v444 = vadd.f32 0.0, %v443
  %445 = vmatprep.mubr.bf16.mxu0 0
  %446 = vmatmul.mubr.bf16.gmra.mxu0 %v130
  %v447 = vpop.f32.mrf.mxu0
  %v448 = vadd.f32 0.0, %v447
  %v449 = vpop.f32.mrf.mxu0
  %v450 = vadd.f32 0.0, %v449
  %v451 = vpop.f32.mrf.mxu0
  %v452 = vadd.f32 0.0, %v451
  %v453 = vpop.f32.mrf.mxu0
  %v454 = vadd.f32 0.0, %v453
  %455 = vmatprep.mubr.bf16.mxu0 0
  %456 = vmatmul.mubr.bf16.gmra.mxu0 %v131
  %v457 = vpop.f32.mrf.mxu0
  %v458 = vadd.f32 0.0, %v457
  %v459 = vpop.f32.mrf.mxu0
  %v460 = vadd.f32 0.0, %v459
  %v461 = vpop.f32.mrf.mxu0
  %v462 = vadd.f32 0.0, %v461
  %v463 = vpop.f32.mrf.mxu0
  %v464 = vadd.f32 0.0, %v463
  %465 = vmatprep.mubr.bf16.mxu0 0
  %466 = vmatmul.mubr.bf16.gmra.mxu0 %v132
  %v467 = vpop.f32.mrf.mxu0
  %v468 = vadd.f32 0.0, %v467
  %v469 = vpop.f32.mrf.mxu0
  %v470 = vadd.f32 0.0, %v469
  %v471 = vpop.f32.mrf.mxu0
  %v472 = vadd.f32 0.0, %v471
  %v473 = vpop.f32.mrf.mxu0
  %v474 = vadd.f32 0.0, %v473
  %475 = vmatprep.mubr.bf16.mxu0 0
  %476 = vmatmul.mubr.bf16.gmra.mxu0 %v133
  %v477 = vpop.f32.mrf.mxu0
  %v478 = vadd.f32 0.0, %v477
  %v479 = vpop.f32.mrf.mxu0
  %v480 = vadd.f32 0.0, %v479
  %v481 = vpop.f32.mrf.mxu0
  %v482 = vadd.f32 0.0, %v481
  %v483 = vpop.f32.mrf.mxu0
  %v484 = vadd.f32 0.0, %v483
  %485 = vmatprep.mubr.bf16.mxu0 0
  %486 = vmatmul.mubr.bf16.gmra.mxu0 %v134
  %v487 = vpop.f32.mrf.mxu0
  %v488 = vadd.f32 0.0, %v487
  %v489 = vpop.f32.mrf.mxu0
  %v490 = vadd.f32 0.0, %v489
  %v491 = vpop.f32.mrf.mxu0
  %v492 = vadd.f32 0.0, %v491
  %v493 = vpop.f32.mrf.mxu0
  %v494 = vadd.f32 0.0, %v493
  %495 = vdwg.mxu0
  %496 = vmatprep.subr.bf16.mxu0 %v332
  %497 = vmatpush1.bf16.msra.mxu0 %v331
  %498 = vmatprep.subr.bf16.mxu0 %v326
  %499 = vmatpush1.bf16.msra.mxu0 %v325
  %500 = vmatprep.subr.bf16.mxu0 %v320
  %501 = vmatpush1.bf16.msra.mxu0 %v319
  %502 = vmatprep.subr.bf16.mxu0 %v314
  %503 = vmatpush1.bf16.msra.mxu0 %v313
  %504 = vmatprep.subr.bf16.mxu0 %v308
  %505 = vmatpush1.bf16.msra.mxu0 %v307
  %506 = vmatprep.subr.bf16.mxu0 %v302
  %507 = vmatpush1.bf16.msra.mxu0 %v301
  %508 = vmatprep.subr.bf16.mxu0 %v296
  %509 = vmatpush1.bf16.msra.mxu0 %v295
  %510 = vmatprep.subr.bf16.mxu0 %v290
  %511 = vmatpush1.bf16.msra.mxu0 %v289
  %512 = vmatprep.subr.bf16.mxu0 0
  %513 = vmatpush2.bf16.msra.mxu0 0
  %514 = vmatprep.subr.bf16.mxu0 0
  %515 = vmatpush2.bf16.msra.mxu0 0
  %516 = vmatprep.subr.bf16.mxu0 0
  %517 = vmatpush2.bf16.msra.mxu0 0
  %518 = vmatprep.subr.bf16.mxu0 0
  %519 = vmatpush2.bf16.msra.mxu0 0
  %520 = vmatprep.subr.bf16.mxu0 0
  %521 = vmatpush2.bf16.msra.mxu0 0
  %522 = vmatprep.subr.bf16.mxu0 0
  %523 = vmatpush2.bf16.msra.mxu0 0
  %524 = vmatprep.subr.bf16.mxu0 0
  %525 = vmatpush2.bf16.msra.mxu0 0
  %526 = vmatprep.subr.bf16.mxu0 0
  %527 = vmatpush2.bf16.msra.mxu0 0
  %528 = vmatprep.mubr.bf16.mxu0 0
  %529 = vmatmul.mubr.bf16.gmra.mxu0 %v127
  %v530 = vpop.f32.mrf.mxu0
  %v531 = vadd.f32 0.0, %v530
  %v532 = vpop.f32.mrf.mxu0
  %v533 = vadd.f32 0.0, %v532
  %v534 = vpop.f32.mrf.mxu0
  %v535 = vadd.f32 0.0, %v534
  %v536 = vpop.f32.mrf.mxu0
  %v537 = vadd.f32 0.0, %v536
  %538 = vmatprep.mubr.bf16.mxu0 0
  %539 = vmatmul.mubr.bf16.gmra.mxu0 %v128
  %v540 = vpop.f32.mrf.mxu0
  %v541 = vadd.f32 0.0, %v540
  %v542 = vpop.f32.mrf.mxu0
  %v543 = vadd.f32 0.0, %v542
  %v544 = vpop.f32.mrf.mxu0
  %v545 = vadd.f32 0.0, %v544
  %v546 = vpop.f32.mrf.mxu0
  %v547 = vadd.f32 0.0, %v546
  %548 = vmatprep.mubr.bf16.mxu0 0
  %549 = vmatmul.mubr.bf16.gmra.mxu0 %v129
  %v550 = vpop.f32.mrf.mxu0
  %v551 = vadd.f32 0.0, %v550
  %v552 = vpop.f32.mrf.mxu0
  %v553 = vadd.f32 0.0, %v552
  %v554 = vpop.f32.mrf.mxu0
  %v555 = vadd.f32 0.0, %v554
  %v556 = vpop.f32.mrf.mxu0
  %v557 = vadd.f32 0.0, %v556
  %558 = vmatprep.mubr.bf16.mxu0 0
  %559 = vmatmul.mubr.bf16.gmra.mxu0 %v130
  %v560 = vpop.f32.mrf.mxu0
  %v561 = vadd.f32 0.0, %v560
  %v562 = vpop.f32.mrf.mxu0
  %v563 = vadd.f32 0.0, %v562
  %v564 = vpop.f32.mrf.mxu0
  %v565 = vadd.f32 0.0, %v564
  %v566 = vpop.f32.mrf.mxu0
  %v567 = vadd.f32 0.0, %v566
  %568 = vmatprep.mubr.bf16.mxu0 0
  %569 = vmatmul.mubr.bf16.gmra.mxu0 %v131
  %v570 = vpop.f32.mrf.mxu0
  %v571 = vadd.f32 0.0, %v570
  %v572 = vpop.f32.mrf.mxu0
  %v573 = vadd.f32 0.0, %v572
  %v574 = vpop.f32.mrf.mxu0
  %v575 = vadd.f32 0.0, %v574
  %v576 = vpop.f32.mrf.mxu0
  %v577 = vadd.f32 0.0, %v576
  %578 = vmatprep.mubr.bf16.mxu0 0
  %579 = vmatmul.mubr.bf16.gmra.mxu0 %v132
  %v580 = vpop.f32.mrf.mxu0
  %v581 = vadd.f32 0.0, %v580
  %v582 = vpop.f32.mrf.mxu0
  %v583 = vadd.f32 0.0, %v582
  %v584 = vpop.f32.mrf.mxu0
  %v585 = vadd.f32 0.0, %v584
  %v586 = vpop.f32.mrf.mxu0
  %v587 = vadd.f32 0.0, %v586
  %588 = vmatprep.mubr.bf16.mxu0 0
  %589 = vmatmul.mubr.bf16.gmra.mxu0 %v133
  %v590 = vpop.f32.mrf.mxu0
  %v591 = vadd.f32 0.0, %v590
  %v592 = vpop.f32.mrf.mxu0
  %v593 = vadd.f32 0.0, %v592
  %v594 = vpop.f32.mrf.mxu0
  %v595 = vadd.f32 0.0, %v594
  %v596 = vpop.f32.mrf.mxu0
  %v597 = vadd.f32 0.0, %v596
  %598 = vmatprep.mubr.bf16.mxu0 0
  %599 = vmatmul.mubr.bf16.gmra.mxu0 %v134
  %v600 = vpop.f32.mrf.mxu0
  %v601 = vadd.f32 0.0, %v600
  %v602 = vpop.f32.mrf.mxu0
  %v603 = vpop.f32.mrf.mxu0
  %v604 = vadd.f32 0.0, %v603
  %v605 = vpop.f32.mrf.mxu0
  %606 = vdwg.mxu0
  %607 = vmatprep.subr.bf16.mxu0 %v334
  %608 = vmatpush1.bf16.msra.mxu0 %v333
  %609 = vmatprep.subr.bf16.mxu0 %v328
  %610 = vmatpush1.bf16.msra.mxu0 %v327
  %611 = vmatprep.subr.bf16.mxu0 %v322
  %612 = vmatpush1.bf16.msra.mxu0 %v321
  %613 = vmatprep.subr.bf16.mxu0 %v316
  %614 = vmatpush1.bf16.msra.mxu0 %v315
  %615 = vmatprep.subr.bf16.mxu0 %v310
  %616 = vmatpush1.bf16.msra.mxu0 %v309
  %617 = vmatprep.subr.bf16.mxu0 %v304
  %618 = vmatpush1.bf16.msra.mxu0 %v303
  %619 = vmatprep.subr.bf16.mxu0 %v298
  %620 = vmatpush1.bf16.msra.mxu0 %v297
  %621 = vmatprep.subr.bf16.mxu0 %v292
  %622 = vmatpush1.bf16.msra.mxu0 %v291
  %623 = vmatprep.subr.bf16.mxu0 0
  %624 = vmatpush2.bf16.msra.mxu0 0
  %625 = vmatprep.subr.bf16.mxu0 0
  %626 = vmatpush2.bf16.msra.mxu0 0
  %627 = vmatprep.subr.bf16.mxu0 0
  %628 = vmatpush2.bf16.msra.mxu0 0
  %629 = vmatprep.subr.bf16.mxu0 0
  %630 = vmatpush2.bf16.msra.mxu0 0
  %631 = vmatprep.subr.bf16.mxu0 0
  %632 = vmatpush2.bf16.msra.mxu0 0
  %633 = vmatprep.subr.bf16.mxu0 0
  %634 = vmatpush2.bf16.msra.mxu0 0
  %635 = vmatprep.subr.bf16.mxu0 0
  %636 = vmatpush2.bf16.msra.mxu0 0
  %637 = vmatprep.subr.bf16.mxu0 0
  %638 = vmatpush2.bf16.msra.mxu0 0
  %639 = vmatprep.mubr.bf16.mxu0 0
  %640 = vmatmul.mubr.bf16.gmra.mxu0 %v127
  %v641 = vpop.f32.mrf.mxu0
  %v642 = vadd.f32 0.0, %v641
  %v643 = vpop.f32.mrf.mxu0
  %v644 = vpop.f32.mrf.mxu0
  %v645 = vadd.f32 0.0, %v644
  %v646 = vpop.f32.mrf.mxu0
  %647 = vmatprep.mubr.bf16.mxu0 0
  %648 = vmatmul.mubr.bf16.gmra.mxu0 %v128
  %v649 = vpop.f32.mrf.mxu0
  %v650 = vadd.f32 0.0, %v649
  %v651 = vpop.f32.mrf.mxu0
  %v652 = vadd.f32 0.0, %v651
  %v653 = vpop.f32.mrf.mxu0
  %v654 = vadd.f32 0.0, %v653
  %v655 = vpop.f32.mrf.mxu0
  %v656 = vadd.f32 0.0, %v655
  %657 = vmatprep.mubr.bf16.mxu0 0
  %658 = vmatmul.mubr.bf16.gmra.mxu0 %v129
  %v659 = vpop.f32.mrf.mxu0
  %v660 = vadd.f32 0.0, %v659
  %v661 = vpop.f32.mrf.mxu0
  %v662 = vadd.f32 0.0, %v661
  %v663 = vpop.f32.mrf.mxu0
  %v664 = vadd.f32 0.0, %v663
  %v665 = vpop.f32.mrf.mxu0
  %v666 = vadd.f32 0.0, %v665
  %667 = vmatprep.mubr.bf16.mxu0 0
  %668 = vmatmul.mubr.bf16.gmra.mxu0 %v130
  %v669 = vpop.f32.mrf.mxu0
  %v670 = vadd.f32 0.0, %v669
  %v671 = vpop.f32.mrf.mxu0
  %v672 = vadd.f32 0.0, %v671
  %v673 = vpop.f32.mrf.mxu0
  %v674 = vadd.f32 0.0, %v673
  %v675 = vpop.f32.mrf.mxu0
  %v676 = vadd.f32 0.0, %v675
  %677 = vmatprep.mubr.bf16.mxu0 0
  %678 = vmatmul.mubr.bf16.gmra.mxu0 %v131
  %v679 = vpop.f32.mrf.mxu0
  %v680 = vadd.f32 0.0, %v679
  %v681 = vpop.f32.mrf.mxu0
  %v682 = vadd.f32 0.0, %v681
  %v683 = vpop.f32.mrf.mxu0
  %v684 = vadd.f32 0.0, %v683
  %v685 = vpop.f32.mrf.mxu0
  %v686 = vadd.f32 0.0, %v685
  %687 = vmatprep.mubr.bf16.mxu0 0
  %688 = vmatmul.mubr.bf16.gmra.mxu0 %v132
  %v689 = vpop.f32.mrf.mxu0
  %v690 = vadd.f32 0.0, %v689
  %v691 = vpop.f32.mrf.mxu0
  %v692 = vadd.f32 0.0, %v691
  %v693 = vpop.f32.mrf.mxu0
  %v694 = vadd.f32 0.0, %v693
  %v695 = vpop.f32.mrf.mxu0
  %v696 = vadd.f32 0.0, %v695
  %697 = vmatprep.mubr.bf16.mxu0 0
  %698 = vmatmul.mubr.bf16.gmra.mxu0 %v133
  %v699 = vpop.f32.mrf.mxu0
  %v700 = vadd.f32 0.0, %v699
  %v701 = vpop.f32.mrf.mxu0
  %v702 = vadd.f32 0.0, %v701
  %v703 = vpop.f32.mrf.mxu0
  %v704 = vadd.f32 0.0, %v703
  %v705 = vpop.f32.mrf.mxu0
  %v706 = vadd.f32 0.0, %v705
  %707 = vmatprep.mubr.bf16.mxu0 0
  %708 = vmatmul.mubr.bf16.gmra.mxu0 %v134
  %v709 = vpop.f32.mrf.mxu0
  %v710 = vpop.f32.mrf.mxu0
  %v711 = vadd.f32 0.0, %v710
  %v712 = vpop.f32.mrf.mxu0
  %v713 = vpop.f32.mrf.mxu0
  %v714 = vadd.f32 0.0, %v713
  %715 = vdwg.mxu0
  %v716 = vld [vmem:[%s3] sm:$0x7]
  %v718 = vlaneseq
  %v719 = vshrl.u32 %v718, 7
  %v720 = vsub.s32 0, %v719
  %v721 = vrot.slane %v716, %v720
  %v723 = vadd.f32 %v418, %v721
  %v724 = vadd.f32 %v422, %v721
  %v725 = vadd.f32 %v428, %v721
  %v726 = vadd.f32 %v432, %v721
  %v727 = vadd.f32 %v438, %v721
  %v728 = vadd.f32 %v442, %v721
  %v729 = vadd.f32 %v448, %v721
  %v730 = vadd.f32 %v452, %v721
  %v731 = vadd.f32 %v458, %v721
  %v732 = vadd.f32 %v462, %v721
  %v733 = vadd.f32 %v468, %v721
  %v734 = vadd.f32 %v472, %v721
  %v735 = vadd.f32 %v478, %v721
  %v736 = vadd.f32 %v482, %v721
  %v737 = vadd.f32 %v488, %v721
  %v738 = vadd.f32 %v492, %v721
  %v739 = vrot.slane %v716, 1
  %v740 = vlaneseq
  %v741 = vshrl.u32 %v740, 7
  %v742 = vsub.s32 0, %v741
  %v743 = vrot.slane %v739, %v742
  %v745 = vadd.f32 %v420, %v743
  %v746 = vadd.f32 %v424, %v743
  %v747 = vadd.f32 %v430, %v743
  %v748 = vadd.f32 %v434, %v743
  %v749 = vadd.f32 %v440, %v743
  %v750 = vadd.f32 %v444, %v743
  %v751 = vadd.f32 %v450, %v743
  %v752 = vadd.f32 %v454, %v743
  %v753 = vadd.f32 %v460, %v743
  %v754 = vadd.f32 %v464, %v743
  %v755 = vadd.f32 %v470, %v743
  %v756 = vadd.f32 %v474, %v743
  %v757 = vadd.f32 %v480, %v743
  %v758 = vadd.f32 %v484, %v743
  %v759 = vadd.f32 %v490, %v743
  %v760 = vadd.f32 %v494, %v743
  %v761 = vrot.slane %v716, 2
  %v762 = vlaneseq
  %v763 = vshrl.u32 %v762, 7
  %v764 = vsub.s32 0, %v763
  %v765 = vrot.slane %v761, %v764
  %v767 = vadd.f32 %v531, %v765
  %v768 = vadd.f32 %v535, %v765
  %v769 = vadd.f32 %v541, %v765
  %v770 = vadd.f32 %v545, %v765
  %v771 = vadd.f32 %v551, %v765
  %v772 = vadd.f32 %v555, %v765
  %v773 = vadd.f32 %v561, %v765
  %v774 = vadd.f32 %v565, %v765
  %v775 = vadd.f32 %v571, %v765
  %v776 = vadd.f32 %v575, %v765
  %v777 = vadd.f32 %v581, %v765
  %v778 = vadd.f32 %v585, %v765
  %v779 = vadd.f32 %v591, %v765
  %v780 = vadd.f32 %v595, %v765
  %v781 = vadd.f32 %v601, %v765
  %v782 = vadd.f32 %v604, %v765
  %v783 = vadd.f32 %v745, 0.0
  %v784 = vadd.f32 %v746, 0.0
  %v785 = vadd.f32 %v747, %v533
  %v786 = vadd.f32 %v748, %v537
  %v787 = vadd.f32 %v749, %v543
  %v788 = vadd.f32 %v750, %v547
  %v789 = vadd.f32 %v751, %v553
  %v790 = vadd.f32 %v752, %v557
  %v791 = vadd.f32 %v753, %v563
  %v792 = vadd.f32 %v754, %v567
  %v793 = vadd.f32 %v755, %v573
  %v794 = vadd.f32 %v756, %v577
  %v795 = vadd.f32 %v757, %v583
  %v796 = vadd.f32 %v758, %v587
  %v797 = vadd.f32 %v759, %v593
  %v798 = vadd.f32 %v760, %v597
  %v799 = vadd.f32 %v767, 0.0
  %v800 = vadd.f32 %v768, 0.0
  %v801 = vadd.f32 %v769, %v642
  %v802 = vadd.f32 %v770, %v645
  %v803 = vadd.f32 %v771, %v650
  %v804 = vadd.f32 %v772, %v654
  %v805 = vadd.f32 %v773, %v660
  %v806 = vadd.f32 %v774, %v664
  %v807 = vadd.f32 %v775, %v670
  %v808 = vadd.f32 %v776, %v674
  %v809 = vadd.f32 %v777, %v680
  %v810 = vadd.f32 %v778, %v684
  %v811 = vadd.f32 %v779, %v690
  %v812 = vadd.f32 %v780, %v694
  %v813 = vadd.f32 %v781, %v700
  %v814 = vadd.f32 %v782, %v704
  %v815 = vadd.f32 %v799, %v652
  %v816 = vadd.f32 %v800, %v656
  %v817 = vadd.f32 %v801, %v662
  %v818 = vadd.f32 %v802, %v666
  %v819 = vadd.f32 %v803, %v672
  %v820 = vadd.f32 %v804, %v676
  %v821 = vadd.f32 %v805, %v682
  %v822 = vadd.f32 %v806, %v686
  %v823 = vadd.f32 %v807, %v692
  %v824 = vadd.f32 %v808, %v696
  %v825 = vadd.f32 %v809, %v702
  %v826 = vadd.f32 %v810, %v706
  %v827 = vadd.f32 %v811, %v711
  %v828 = vadd.f32 %v812, %v714
  %v829 = vadd.f32 %v813, 0.0
  %v830 = vadd.f32 %v814, 0.0
  %v831 = vmax.f32 %v723, %v783
  %v832 = vmax.f32 %v724, %v784
  %v833 = vmax.f32 %v725, %v785
  %v834 = vmax.f32 %v726, %v786
  %v835 = vmax.f32 %v727, %v787
  %v836 = vmax.f32 %v728, %v788
  %v837 = vmax.f32 %v729, %v789
  %v838 = vmax.f32 %v730, %v790
  %v839 = vmax.f32 %v731, %v791
  %v840 = vmax.f32 %v732, %v792
  %v841 = vmax.f32 %v733, %v793
  %v842 = vmax.f32 %v734, %v794
  %v843 = vmax.f32 %v735, %v795
  %v844 = vmax.f32 %v736, %v796
  %v845 = vmax.f32 %v737, %v797
  %v846 = vmax.f32 %v738, %v798
  %v847 = vmax.f32 %v831, %v815
  %v848 = vmax.f32 %v832, %v816
  %v849 = vmax.f32 %v833, %v817
  %v850 = vmax.f32 %v834, %v818
  %v851 = vmax.f32 %v835, %v819
  %v852 = vmax.f32 %v836, %v820
  %v853 = vmax.f32 %v837, %v821
  %v854 = vmax.f32 %v838, %v822
  %v855 = vmax.f32 %v839, %v823
  %v856 = vmax.f32 %v840, %v824
  %v857 = vmax.f32 %v841, %v825
  %v858 = vmax.f32 %v842, %v826
  %v859 = vmax.f32 %v843, %v827
  %v860 = vmax.f32 %v844, %v828
  %v861 = vmax.f32 %v845, %v829
  %v862 = vmax.f32 %v846, %v830
  %v863 = vtanh.pop %v847
  %v864 = vtanh.pop %v848
  %v865 = vtanh.pop %v849
  %v866 = vtanh.pop %v850
  %v867 = vtanh.pop %v851
  %v868 = vtanh.pop %v852
  %v869 = vtanh.pop %v853
  %v870 = vtanh.pop %v854
  %v871 = vtanh.pop %v855
  %v872 = vtanh.pop %v856
  %v873 = vtanh.pop %v857
  %v874 = vtanh.pop %v858
  %v875 = vtanh.pop %v859
  %v876 = vtanh.pop %v860
  %v877 = vtanh.pop %v861
  %v878 = vtanh.pop %v862
  %879 = vst [vmem:[%s8] sm:$0xff] %v863
  %880 = vst [vmem:[%s8 + $0x8] sm:$0xff] %v864
  %881 = vst [vmem:[%s8 + $0x10] sm:$0xff] %v865
  %882 = vst [vmem:[%s8 + $0x18] sm:$0xff] %v866
  %883 = vst [vmem:[%s8 + $0x20] sm:$0xff] %v867
  %884 = vst [vmem:[%s8 + $0x28] sm:$0xff] %v868
  %885 = vst [vmem:[%s8 + $0x30] sm:$0xff] %v869
  %886 = vst [vmem:[%s8 + $0x38] sm:$0xff] %v870
  %887 = vst [vmem:[%s8 + $0x40] sm:$0xff] %v871
  %888 = vst [vmem:[%s8 + $0x48] sm:$0xff] %v872
  %889 = vst [vmem:[%s8 + $0x50] sm:$0xff] %v873
  %890 = vst [vmem:[%s8 + $0x58] sm:$0xff] %v874
  %891 = vst [vmem:[%s8 + $0x60] sm:$0xff] %v875
  %892 = vst [vmem:[%s8 + $0x68] sm:$0xff] %v876
  %893 = vst [vmem:[%s8 + $0x70] sm:$0xff] %v877
  %894 = vst [vmem:[%s8 + $0x78] sm:$0xff] %v878
  %v895 = vpack.c.bf16 %v864, %v863
  %v896 = vpack.c.bf16 %v866, %v865
  %v897 = vpack.c.bf16 %v868, %v867
  %v898 = vpack.c.bf16 %v870, %v869
  %v899 = vpack.c.bf16 %v872, %v871
  %v900 = vpack.c.bf16 %v874, %v873
  %v901 = vpack.c.bf16 %v876, %v875
  %v902 = vpack.c.bf16 %v878, %v877
  %v903 = vld [vmem:[%s4] sm:$0xff]
  %v904 = vld [vmem:[%s4 + $0x8] sm:$0xff]
  %v905 = vld [vmem:[%s4 + $0x10] sm:$0xff]
  %v906 = vld [vmem:[%s4 + $0x18] sm:$0xff]
  %v907 = vld [vmem:[%s4 + $0x20] sm:$0xff]
  %v908 = vld [vmem:[%s4 + $0x28] sm:$0xff]
  %v909 = vld [vmem:[%s4 + $0x30] sm:$0xff]
  %v910 = vld [vmem:[%s4 + $0x38] sm:$0xff]
  %v911 = vld [vmem:[%s4 + $0x40] sm:$0xff]
  %v912 = vld [vmem:[%s4 + $0x48] sm:$0xff]
  %v913 = vld [vmem:[%s4 + $0x50] sm:$0xff]
  %v914 = vld [vmem:[%s4 + $0x58] sm:$0xff]
  %v915 = vld [vmem:[%s4 + $0x60] sm:$0xff]
  %v916 = vld [vmem:[%s4 + $0x68] sm:$0xff]
  %v917 = vld [vmem:[%s4 + $0x70] sm:$0xff]
  %v918 = vld [vmem:[%s4 + $0x78] sm:$0xff]
  %v919 = vld [vmem:[%s4 + $0x80] sm:$0xff]
  %v920 = vld [vmem:[%s4 + $0x88] sm:$0xff]
  %v921 = vld [vmem:[%s4 + $0x90] sm:$0xff]
  %v922 = vld [vmem:[%s4 + $0x98] sm:$0xff]
  %v923 = vld [vmem:[%s4 + $0xa0] sm:$0xff]
  %v924 = vld [vmem:[%s4 + $0xa8] sm:$0xff]
  %v925 = vld [vmem:[%s4 + $0xb0] sm:$0xff]
  %v926 = vld [vmem:[%s4 + $0xb8] sm:$0xff]
  %v927 = vld [vmem:[%s4 + $0xc0] sm:$0xff]
  %v928 = vld [vmem:[%s4 + $0xc8] sm:$0xff]
  %v929 = vld [vmem:[%s4 + $0xd0] sm:$0xff]
  %v930 = vld [vmem:[%s4 + $0xd8] sm:$0xff]
  %v931 = vld [vmem:[%s4 + $0xe0] sm:$0xff]
  %v932 = vld [vmem:[%s4 + $0xe8] sm:$0xff]
  %v933 = vld [vmem:[%s4 + $0xf0] sm:$0xff]
  %v934 = vld [vmem:[%s4 + $0xf8] sm:$0xff]
  %v935 = vld [vmem:[%s5] sm:$0xf]
  %v937 = vlaneseq
  %v938 = vshrl.u32 %v937, 7
  %v939 = vsub.s32 0, %v938
  %v940 = vrot.slane %v935, %v939
  %v941 = vlaneseq
  %v942 = vshrl.u32 %v941, 7
  %v943 = vsub.s32 1, %v942
  %v944 = vrot.slane %v935, %v943
  %v945 = vlaneseq
  %v946 = vshrl.u32 %v945, 7
  %v947 = vsub.s32 2, %v946
  %v948 = vrot.slane %v935, %v947
  %v949 = vlaneseq
  %v950 = vshrl.u32 %v949, 7
  %v951 = vsub.s32 3, %v950
  %v952 = vrot.slane %v935, %v951
  %v989 = vunpack.c.l.b16 %v903
  %v990 = vunpack.c.h.b16 %v903
  %v991 = vunpack.c.l.b16 %v904
  %v992 = vunpack.c.h.b16 %v904
  %v993 = vunpack.c.l.b16 %v905
  %v994 = vunpack.c.h.b16 %v905
  %v995 = vunpack.c.l.b16 %v906
  %v996 = vunpack.c.h.b16 %v906
  %v997 = vunpack.c.l.b16 %v907
  %v998 = vunpack.c.h.b16 %v907
  %v999 = vunpack.c.l.b16 %v908
  %v1000 = vunpack.c.h.b16 %v908
  %v1001 = vunpack.c.l.b16 %v909
  %v1002 = vunpack.c.h.b16 %v909
  %v1003 = vunpack.c.l.b16 %v910
  %v1004 = vunpack.c.h.b16 %v910
  %v1005 = vunpack.c.l.b16 %v911
  %v1006 = vunpack.c.h.b16 %v911
  %v1007 = vunpack.c.l.b16 %v912
  %v1008 = vunpack.c.h.b16 %v912
  %v1009 = vunpack.c.l.b16 %v913
  %v1010 = vunpack.c.h.b16 %v913
  %v1011 = vunpack.c.l.b16 %v914
  %v1012 = vunpack.c.h.b16 %v914
  %v1013 = vunpack.c.l.b16 %v915
  %v1014 = vunpack.c.h.b16 %v915
  %v1015 = vunpack.c.l.b16 %v916
  %v1016 = vunpack.c.h.b16 %v916
  %v1017 = vunpack.c.l.b16 %v917
  %v1018 = vunpack.c.h.b16 %v917
  %v1019 = vunpack.c.l.b16 %v918
  %v1020 = vunpack.c.h.b16 %v918
  %v1021 = vunpack.c.l.b16 %v919
  %v1022 = vunpack.c.h.b16 %v919
  %v1023 = vunpack.c.l.b16 %v920
  %v1024 = vunpack.c.h.b16 %v920
  %v1025 = vunpack.c.l.b16 %v921
  %v1026 = vunpack.c.h.b16 %v921
  %v1027 = vunpack.c.l.b16 %v922
  %v1028 = vunpack.c.h.b16 %v922
  %v1029 = vunpack.c.l.b16 %v923
  %v1030 = vunpack.c.h.b16 %v923
  %v1031 = vunpack.c.l.b16 %v924
  %v1032 = vunpack.c.h.b16 %v924
  %v1033 = vunpack.c.l.b16 %v925
  %v1034 = vunpack.c.h.b16 %v925
  %v1035 = vunpack.c.l.b16 %v926
  %v1036 = vunpack.c.h.b16 %v926
  %v1037 = vunpack.c.l.b16 %v927
  %v1038 = vunpack.c.h.b16 %v927
  %v1039 = vunpack.c.l.b16 %v928
  %v1040 = vunpack.c.h.b16 %v928
  %v1041 = vunpack.c.l.b16 %v929
  %v1042 = vunpack.c.h.b16 %v929
  %v1043 = vunpack.c.l.b16 %v930
  %v1044 = vunpack.c.h.b16 %v930
  %v1045 = vunpack.c.l.b16 %v931
  %v1046 = vunpack.c.h.b16 %v931
  %v1047 = vunpack.c.l.b16 %v932
  %v1048 = vunpack.c.h.b16 %v932
  %v1049 = vunpack.c.l.b16 %v933
  %v1050 = vunpack.c.h.b16 %v933
  %v1051 = vunpack.c.l.b16 %v934
  %v1052 = vunpack.c.h.b16 %v934
  %v1053 = vpack.c.b16 %v993, %v989
  %v1054 = vpack.c.b16 %v994, %v990
  %v1055 = vpack.c.b16 %v995, %v991
  %v1056 = vpack.c.b16 %v996, %v992
  %v1057 = vpack.c.b16 %v1001, %v997
  %v1058 = vpack.c.b16 %v1002, %v998
  %v1059 = vpack.c.b16 %v1003, %v999
  %v1060 = vpack.c.b16 %v1004, %v1000
  %v1061 = vpack.c.b16 %v1009, %v1005
  %v1062 = vpack.c.b16 %v1010, %v1006
  %v1063 = vpack.c.b16 %v1011, %v1007
  %v1064 = vpack.c.b16 %v1012, %v1008
  %v1065 = vpack.c.b16 %v1017, %v1013
  %v1066 = vpack.c.b16 %v1018, %v1014
  %v1067 = vpack.c.b16 %v1019, %v1015
  %v1068 = vpack.c.b16 %v1020, %v1016
  %v1069 = vpack.c.b16 %v1025, %v1021
  %v1070 = vpack.c.b16 %v1026, %v1022
  %v1071 = vpack.c.b16 %v1027, %v1023
  %v1072 = vpack.c.b16 %v1028, %v1024
  %v1073 = vpack.c.b16 %v1033, %v1029
  %v1074 = vpack.c.b16 %v1034, %v1030
  %v1075 = vpack.c.b16 %v1035, %v1031
  %v1076 = vpack.c.b16 %v1036, %v1032
  %v1077 = vpack.c.b16 %v1041, %v1037
  %v1078 = vpack.c.b16 %v1042, %v1038
  %v1079 = vpack.c.b16 %v1043, %v1039
  %v1080 = vpack.c.b16 %v1044, %v1040
  %v1081 = vpack.c.b16 %v1049, %v1045
  %v1082 = vpack.c.b16 %v1050, %v1046
  %v1083 = vpack.c.b16 %v1051, %v1047
  %v1084 = vpack.c.b16 %v1052, %v1048
  %1117 = vmatprep.subr.bf16.mxu0 %v1082
  %1118 = vmatpush1.bf16.msra.mxu0 %v1081
  %1119 = vmatprep.subr.bf16.mxu0 %v1078
  %1120 = vmatpush1.bf16.msra.mxu0 %v1077
  %1121 = vmatprep.subr.bf16.mxu0 %v1074
  %1122 = vmatpush1.bf16.msra.mxu0 %v1073
  %1123 = vmatprep.subr.bf16.mxu0 %v1070
  %1124 = vmatpush1.bf16.msra.mxu0 %v1069
  %1125 = vmatprep.subr.bf16.mxu0 %v1066
  %1126 = vmatpush1.bf16.msra.mxu0 %v1065
  %1127 = vmatprep.subr.bf16.mxu0 %v1062
  %1128 = vmatpush1.bf16.msra.mxu0 %v1061
  %1129 = vmatprep.subr.bf16.mxu0 %v1058
  %1130 = vmatpush1.bf16.msra.mxu0 %v1057
  %1131 = vmatprep.subr.bf16.mxu0 %v1054
  %1132 = vmatpush1.bf16.msra.mxu0 %v1053
  %1133 = vmatprep.subr.bf16.mxu0 0
  %1134 = vmatpush2.bf16.msra.mxu0 0
  %1135 = vmatprep.subr.bf16.mxu0 0
  %1136 = vmatpush2.bf16.msra.mxu0 0
  %1137 = vmatprep.subr.bf16.mxu0 0
  %1138 = vmatpush2.bf16.msra.mxu0 0
  %1139 = vmatprep.subr.bf16.mxu0 0
  %1140 = vmatpush2.bf16.msra.mxu0 0
  %1141 = vmatprep.subr.bf16.mxu0 0
  %1142 = vmatpush2.bf16.msra.mxu0 0
  %1143 = vmatprep.subr.bf16.mxu0 0
  %1144 = vmatpush2.bf16.msra.mxu0 0
  %1145 = vmatprep.subr.bf16.mxu0 0
  %1146 = vmatpush2.bf16.msra.mxu0 0
  %1147 = vmatprep.subr.bf16.mxu0 0
  %1148 = vmatpush2.bf16.msra.mxu0 0
  %1149 = vmatprep.mubr.bf16.mxu0 0
  %1150 = vmatmul.mubr.bf16.gmra.mxu0 %v895
  %v1151 = vpop.f32.mrf.mxu0
  %v1152 = vadd.f32 %v940, %v1151
  %v1153 = vpop.f32.mrf.mxu0
  %v1154 = vadd.f32 %v944, %v1153
  %v1155 = vpop.f32.mrf.mxu0
  %v1156 = vadd.f32 %v940, %v1155
  %v1157 = vpop.f32.mrf.mxu0
  %v1158 = vadd.f32 %v944, %v1157
  %1159 = vmatprep.mubr.bf16.mxu0 0
  %1160 = vmatmul.mubr.bf16.gmra.mxu0 %v896
  %v1161 = vpop.f32.mrf.mxu0
  %v1162 = vadd.f32 %v940, %v1161
  %v1163 = vpop.f32.mrf.mxu0
  %v1164 = vadd.f32 %v944, %v1163
  %v1165 = vpop.f32.mrf.mxu0
  %v1166 = vadd.f32 %v940, %v1165
  %v1167 = vpop.f32.mrf.mxu0
  %v1168 = vadd.f32 %v944, %v1167
  %1169 = vmatprep.mubr.bf16.mxu0 0
  %1170 = vmatmul.mubr.bf16.gmra.mxu0 %v897
  %v1171 = vpop.f32.mrf.mxu0
  %v1172 = vadd.f32 %v940, %v1171
  %v1173 = vpop.f32.mrf.mxu0
  %v1174 = vadd.f32 %v944, %v1173
  %v1175 = vpop.f32.mrf.mxu0
  %v1176 = vadd.f32 %v940, %v1175
  %v1177 = vpop.f32.mrf.mxu0
  %v1178 = vadd.f32 %v944, %v1177
  %1179 = vmatprep.mubr.bf16.mxu0 0
  %1180 = vmatmul.mubr.bf16.gmra.mxu0 %v898
  %v1181 = vpop.f32.mrf.mxu0
  %v1182 = vadd.f32 %v940, %v1181
  %v1183 = vpop.f32.mrf.mxu0
  %v1184 = vadd.f32 %v944, %v1183
  %v1185 = vpop.f32.mrf.mxu0
  %v1186 = vadd.f32 %v940, %v1185
  %v1187 = vpop.f32.mrf.mxu0
  %v1188 = vadd.f32 %v944, %v1187
  %1189 = vmatprep.mubr.bf16.mxu0 0
  %1190 = vmatmul.mubr.bf16.gmra.mxu0 %v899
  %v1191 = vpop.f32.mrf.mxu0
  %v1192 = vadd.f32 %v940, %v1191
  %v1193 = vpop.f32.mrf.mxu0
  %v1194 = vadd.f32 %v944, %v1193
  %v1195 = vpop.f32.mrf.mxu0
  %v1196 = vadd.f32 %v940, %v1195
  %v1197 = vpop.f32.mrf.mxu0
  %v1198 = vadd.f32 %v944, %v1197
  %1199 = vmatprep.mubr.bf16.mxu0 0
  %1200 = vmatmul.mubr.bf16.gmra.mxu0 %v900
  %v1201 = vpop.f32.mrf.mxu0
  %v1202 = vadd.f32 %v940, %v1201
  %v1203 = vpop.f32.mrf.mxu0
  %v1204 = vadd.f32 %v944, %v1203
  %v1205 = vpop.f32.mrf.mxu0
  %v1206 = vadd.f32 %v940, %v1205
  %v1207 = vpop.f32.mrf.mxu0
  %v1208 = vadd.f32 %v944, %v1207
  %1209 = vmatprep.mubr.bf16.mxu0 0
  %1210 = vmatmul.mubr.bf16.gmra.mxu0 %v901
  %v1211 = vpop.f32.mrf.mxu0
  %v1212 = vadd.f32 %v940, %v1211
  %v1213 = vpop.f32.mrf.mxu0
  %v1214 = vadd.f32 %v944, %v1213
  %v1215 = vpop.f32.mrf.mxu0
  %v1216 = vadd.f32 %v940, %v1215
  %v1217 = vpop.f32.mrf.mxu0
  %v1218 = vadd.f32 %v944, %v1217
  %1219 = vmatprep.mubr.bf16.mxu0 0
  %1220 = vmatmul.mubr.bf16.gmra.mxu0 %v902
  %v1221 = vpop.f32.mrf.mxu0
  %v1222 = vadd.f32 %v940, %v1221
  %v1223 = vpop.f32.mrf.mxu0
  %v1224 = vadd.f32 %v944, %v1223
  %v1225 = vpop.f32.mrf.mxu0
  %v1226 = vadd.f32 %v940, %v1225
  %v1227 = vpop.f32.mrf.mxu0
  %v1228 = vadd.f32 %v944, %v1227
  %1229 = vdwg.mxu0
  %1230 = vmatprep.subr.bf16.mxu0 %v1084
  %1231 = vmatpush1.bf16.msra.mxu0 %v1083
  %1232 = vmatprep.subr.bf16.mxu0 %v1080
  %1233 = vmatpush1.bf16.msra.mxu0 %v1079
  %1234 = vmatprep.subr.bf16.mxu0 %v1076
  %1235 = vmatpush1.bf16.msra.mxu0 %v1075
  %1236 = vmatprep.subr.bf16.mxu0 %v1072
  %1237 = vmatpush1.bf16.msra.mxu0 %v1071
  %1238 = vmatprep.subr.bf16.mxu0 %v1068
  %1239 = vmatpush1.bf16.msra.mxu0 %v1067
  %1240 = vmatprep.subr.bf16.mxu0 %v1064
  %1241 = vmatpush1.bf16.msra.mxu0 %v1063
  %1242 = vmatprep.subr.bf16.mxu0 %v1060
  %1243 = vmatpush1.bf16.msra.mxu0 %v1059
  %1244 = vmatprep.subr.bf16.mxu0 %v1056
  %1245 = vmatpush1.bf16.msra.mxu0 %v1055
  %1246 = vmatprep.subr.bf16.mxu0 0
  %1247 = vmatpush2.bf16.msra.mxu0 0
  %1248 = vmatprep.subr.bf16.mxu0 0
  %1249 = vmatpush2.bf16.msra.mxu0 0
  %1250 = vmatprep.subr.bf16.mxu0 0
  %1251 = vmatpush2.bf16.msra.mxu0 0
  %1252 = vmatprep.subr.bf16.mxu0 0
  %1253 = vmatpush2.bf16.msra.mxu0 0
  %1254 = vmatprep.subr.bf16.mxu0 0
  %1255 = vmatpush2.bf16.msra.mxu0 0
  %1256 = vmatprep.subr.bf16.mxu0 0
  %1257 = vmatpush2.bf16.msra.mxu0 0
  %1258 = vmatprep.subr.bf16.mxu0 0
  %1259 = vmatpush2.bf16.msra.mxu0 0
  %1260 = vmatprep.subr.bf16.mxu0 0
  %1261 = vmatpush2.bf16.msra.mxu0 0
  %1262 = vmatprep.mubr.bf16.mxu0 0
  %1263 = vmatmul.mubr.bf16.gmra.mxu0 %v895
  %v1264 = vpop.f32.mrf.mxu0
  %v1265 = vadd.f32 %v948, %v1264
  %v1266 = vpop.f32.mrf.mxu0
  %v1267 = vadd.f32 %v952, %v1266
  %v1268 = vpop.f32.mrf.mxu0
  %v1269 = vadd.f32 %v948, %v1268
  %v1270 = vpop.f32.mrf.mxu0
  %v1271 = vadd.f32 %v952, %v1270
  %1272 = vmatprep.mubr.bf16.mxu0 0
  %1273 = vmatmul.mubr.bf16.gmra.mxu0 %v896
  %v1274 = vpop.f32.mrf.mxu0
  %v1275 = vadd.f32 %v948, %v1274
  %v1276 = vpop.f32.mrf.mxu0
  %v1277 = vadd.f32 %v952, %v1276
  %v1278 = vpop.f32.mrf.mxu0
  %v1279 = vadd.f32 %v948, %v1278
  %v1280 = vpop.f32.mrf.mxu0
  %v1281 = vadd.f32 %v952, %v1280
  %1282 = vmatprep.mubr.bf16.mxu0 0
  %1283 = vmatmul.mubr.bf16.gmra.mxu0 %v897
  %v1284 = vpop.f32.mrf.mxu0
  %v1285 = vadd.f32 %v948, %v1284
  %v1286 = vpop.f32.mrf.mxu0
  %v1287 = vadd.f32 %v952, %v1286
  %v1288 = vpop.f32.mrf.mxu0
  %v1289 = vadd.f32 %v948, %v1288
  %v1290 = vpop.f32.mrf.mxu0
  %v1291 = vadd.f32 %v952, %v1290
  %1292 = vmatprep.mubr.bf16.mxu0 0
  %1293 = vmatmul.mubr.bf16.gmra.mxu0 %v898
  %v1294 = vpop.f32.mrf.mxu0
  %v1295 = vadd.f32 %v948, %v1294
  %v1296 = vpop.f32.mrf.mxu0
  %v1297 = vadd.f32 %v952, %v1296
  %v1298 = vpop.f32.mrf.mxu0
  %v1299 = vadd.f32 %v948, %v1298
  %v1300 = vpop.f32.mrf.mxu0
  %v1301 = vadd.f32 %v952, %v1300
  %1302 = vmatprep.mubr.bf16.mxu0 0
  %1303 = vmatmul.mubr.bf16.gmra.mxu0 %v899
  %v1304 = vpop.f32.mrf.mxu0
  %v1305 = vadd.f32 %v948, %v1304
  %v1306 = vpop.f32.mrf.mxu0
  %v1307 = vadd.f32 %v952, %v1306
  %v1308 = vpop.f32.mrf.mxu0
  %v1309 = vadd.f32 %v948, %v1308
  %v1310 = vpop.f32.mrf.mxu0
  %v1311 = vadd.f32 %v952, %v1310
  %1312 = vmatprep.mubr.bf16.mxu0 0
  %1313 = vmatmul.mubr.bf16.gmra.mxu0 %v900
  %v1314 = vpop.f32.mrf.mxu0
  %v1315 = vadd.f32 %v948, %v1314
  %v1316 = vpop.f32.mrf.mxu0
  %v1317 = vadd.f32 %v952, %v1316
  %v1318 = vpop.f32.mrf.mxu0
  %v1319 = vadd.f32 %v948, %v1318
  %v1320 = vpop.f32.mrf.mxu0
  %v1321 = vadd.f32 %v952, %v1320
  %1322 = vmatprep.mubr.bf16.mxu0 0
  %1323 = vmatmul.mubr.bf16.gmra.mxu0 %v901
  %v1324 = vpop.f32.mrf.mxu0
  %v1325 = vadd.f32 %v948, %v1324
  %v1326 = vpop.f32.mrf.mxu0
  %v1327 = vadd.f32 %v952, %v1326
  %v1328 = vpop.f32.mrf.mxu0
  %v1329 = vadd.f32 %v948, %v1328
  %v1330 = vpop.f32.mrf.mxu0
  %v1331 = vadd.f32 %v952, %v1330
  %1332 = vmatprep.mubr.bf16.mxu0 0
  %1333 = vmatmul.mubr.bf16.gmra.mxu0 %v902
  %v1334 = vpop.f32.mrf.mxu0
  %v1335 = vadd.f32 %v948, %v1334
  %v1336 = vpop.f32.mrf.mxu0
  %v1337 = vadd.f32 %v952, %v1336
  %v1338 = vpop.f32.mrf.mxu0
  %v1339 = vadd.f32 %v948, %v1338
  %v1340 = vpop.f32.mrf.mxu0
  %v1341 = vadd.f32 %v952, %v1340
  %1342 = vdwg.mxu0
  %1343 = vst [vmem:[#allocation2] sm:$0xff] %v1152
  %1344 = vst [vmem:[#allocation2 + $0x8] sm:$0xff] %v1154
  %1345 = vst [vmem:[#allocation2 + $0x10] sm:$0xff] %v1265
  %1346 = vst [vmem:[#allocation2 + $0x18] sm:$0xff] %v1267
  %1347 = vst [vmem:[#allocation2 + $0x20] sm:$0xff] %v1156
  %1348 = vst [vmem:[#allocation2 + $0x28] sm:$0xff] %v1158
  %1349 = vst [vmem:[#allocation2 + $0x30] sm:$0xff] %v1269
  %1350 = vst [vmem:[#allocation2 + $0x38] sm:$0xff] %v1271
  %1351 = vst [vmem:[#allocation2 + $0x40] sm:$0xff] %v1162
  %1352 = vst [vmem:[#allocation2 + $0x48] sm:$0xff] %v1164
  %1353 = vst [vmem:[#allocation2 + $0x50] sm:$0xff] %v1275
  %1354 = vst [vmem:[#allocation2 + $0x58] sm:$0xff] %v1277
  %1355 = vst [vmem:[#allocation2 + $0x60] sm:$0xff] %v1166
  %1356 = vst [vmem:[#allocation2 + $0x68] sm:$0xff] %v1168
  %1357 = vst [vmem:[#allocation2 + $0x70] sm:$0xff] %v1279
  %1358 = vst [vmem:[#allocation2 + $0x78] sm:$0xff] %v1281
  %1359 = vst [vmem:[#allocation2 + $0x80] sm:$0xff] %v1172
  %1360 = vst [vmem:[#allocation2 + $0x88] sm:$0xff] %v1174
  %1361 = vst [vmem:[#allocation2 + $0x90] sm:$0xff] %v1285
  %1362 = vst [vmem:[#allocation2 + $0x98] sm:$0xff] %v1287
  %1363 = vst [vmem:[#allocation2 + $0xa0] sm:$0xff] %v1176
  %1364 = vst [vmem:[#allocation2 + $0xa8] sm:$0xff] %v1178
  %1365 = vst [vmem:[#allocation2 + $0xb0] sm:$0xff] %v1289
  %1366 = vst [vmem:[#allocation2 + $0xb8] sm:$0xff] %v1291
  %1367 = vst [vmem:[#allocation2 + $0xc0] sm:$0xff] %v1182
  %1368 = vst [vmem:[#allocation2 + $0xc8] sm:$0xff] %v1184
  %1369 = vst [vmem:[#allocation2 + $0xd0] sm:$0xff] %v1295
  %1370 = vst [vmem:[#allocation2 + $0xd8] sm:$0xff] %v1297
  %1371 = vst [vmem:[#allocation2 + $0xe0] sm:$0xff] %v1186
  %1372 = vst [vmem:[#allocation2 + $0xe8] sm:$0xff] %v1188
  %1373 = vst [vmem:[#allocation2 + $0xf0] sm:$0xff] %v1299
  %1374 = vst [vmem:[#allocation2 + $0xf8] sm:$0xff] %v1301
  %1375 = vst [vmem:[#allocation2 + $0x100] sm:$0xff] %v1192
  %1376 = vst [vmem:[#allocation2 + $0x108] sm:$0xff] %v1194
  %1377 = vst [vmem:[#allocation2 + $0x110] sm:$0xff] %v1305
  %1378 = vst [vmem:[#allocation2 + $0x118] sm:$0xff] %v1307
  %1379 = vst [vmem:[#allocation2 + $0x120] sm:$0xff] %v1196
  %1380 = vst [vmem:[#allocation2 + $0x128] sm:$0xff] %v1198
  %1381 = vst [vmem:[#allocation2 + $0x130] sm:$0xff] %v1309
  %1382 = vst [vmem:[#allocation2 + $0x138] sm:$0xff] %v1311
  %1383 = vst [vmem:[#allocation2 + $0x140] sm:$0xff] %v1202
  %1384 = vst [vmem:[#allocation2 + $0x148] sm:$0xff] %v1204
  %1385 = vst [vmem:[#allocation2 + $0x150] sm:$0xff] %v1315
  %1386 = vst [vmem:[#allocation2 + $0x158] sm:$0xff] %v1317
  %1387 = vst [vmem:[#allocation2 + $0x160] sm:$0xff] %v1206
  %1388 = vst [vmem:[#allocation2 + $0x168] sm:$0xff] %v1208
  %1389 = vst [vmem:[#allocation2 + $0x170] sm:$0xff] %v1319
  %1390 = vst [vmem:[#allocation2 + $0x178] sm:$0xff] %v1321
  %1391 = vst [vmem:[#allocation2 + $0x180] sm:$0xff] %v1212
  %1392 = vst [vmem:[#allocation2 + $0x188] sm:$0xff] %v1214
  %1393 = vst [vmem:[#allocation2 + $0x190] sm:$0xff] %v1325
  %1394 = vst [vmem:[#allocation2 + $0x198] sm:$0xff] %v1327
  %1395 = vst [vmem:[#allocation2 + $0x1a0] sm:$0xff] %v1216
  %1396 = vst [vmem:[#allocation2 + $0x1a8] sm:$0xff] %v1218
  %1397 = vst [vmem:[#allocation2 + $0x1b0] sm:$0xff] %v1329
  %1398 = vst [vmem:[#allocation2 + $0x1b8] sm:$0xff] %v1331
  %1399 = vst [vmem:[#allocation2 + $0x1c0] sm:$0xff] %v1222
  %1400 = vst [vmem:[#allocation2 + $0x1c8] sm:$0xff] %v1224
  %1401 = vst [vmem:[#allocation2 + $0x1d0] sm:$0xff] %v1335
  %1402 = vst [vmem:[#allocation2 + $0x1d8] sm:$0xff] %v1337
  %1403 = vst [vmem:[#allocation2 + $0x1e0] sm:$0xff] %v1226
  %1404 = vst [vmem:[#allocation2 + $0x1e8] sm:$0xff] %v1228
  %1405 = vst [vmem:[#allocation2 + $0x1f0] sm:$0xff] %v1339
  %1406 = vst [vmem:[#allocation2 + $0x1f8] sm:$0xff] %v1341
  %v1407 = vld [vmem:[%s7] sm:$0xff]
  %v1408 = vld [vmem:[%s7 + $0x8] sm:$0xff]
  %s1409 = sld [smem:[#allocation4]]
  %p1410 = scmp.lt.s32.totalorder %s1409, 8
  %s1411 = scalar_select %p1410, %s1409, 8
  // While loop
  $region30: #{question_processor_forward.1} parent=0 // loop_pre_header
    _
  $region31: #{question_processor_forward.1} parent=0 // loop_header
    %s1413 = sphi 0, %s1415
    %p1414 = scmp.ge.s32.totalorder %s1413, %s1411
    %v1418 = vphi 0.0, %v1766
    %v1419 = vphi 0.0, %v1767
    %v1420 = vphi 0.0, %v1762
    %v1421 = vphi 0.0, %v1763
  $region32: #{question_processor_forward.1} parent=0 // loop_header_branch
    %1417 = sbr.rel (%p1414) target = $region36
  $region33: #{question_processor_forward.1} parent=0 // loop_body
    %s1422 = smul.u32 %s1413, 8
    %s1423 = smul.addr %s1422, 8
    %s1424 = scalar_lea.vmem [#allocation2], %s1423
    %v1425 = vld [vmem:[%s1424] sm:$0xff]
    %v1426 = vld [vmem:[%s1424 + $0x8] sm:$0xff]
    %v1427 = vld [vmem:[%s1424 + $0x10] sm:$0xff]
    %v1428 = vld [vmem:[%s1424 + $0x18] sm:$0xff]
    %v1429 = vld [vmem:[%s1424 + $0x20] sm:$0xff]
    %v1430 = vld [vmem:[%s1424 + $0x28] sm:$0xff]
    %v1431 = vld [vmem:[%s1424 + $0x30] sm:$0xff]
    %v1432 = vld [vmem:[%s1424 + $0x38] sm:$0xff]
    %v1433 = vpack.c.bf16 %v1419, %v1418
    %v1434 = vld [vmem:[%s6] sm:$0xff]
    %v1435 = vld [vmem:[%s6 + $0x8] sm:$0xff]
    %v1436 = vld [vmem:[%s6 + $0x10] sm:$0xff]
    %v1437 = vld [vmem:[%s6 + $0x18] sm:$0xff]
    %v1438 = vld [vmem:[%s6 + $0x20] sm:$0xff]
    %v1439 = vld [vmem:[%s6 + $0x28] sm:$0xff]
    %v1440 = vld [vmem:[%s6 + $0x30] sm:$0xff]
    %v1441 = vld [vmem:[%s6 + $0x38] sm:$0xff]
    %v1442 = vld [vmem:[%s6 + $0x40] sm:$0xff]
    %v1443 = vld [vmem:[%s6 + $0x48] sm:$0xff]
    %v1444 = vld [vmem:[%s6 + $0x50] sm:$0xff]
    %v1445 = vld [vmem:[%s6 + $0x58] sm:$0xff]
    %v1446 = vld [vmem:[%s6 + $0x60] sm:$0xff]
    %v1447 = vld [vmem:[%s6 + $0x68] sm:$0xff]
    %v1448 = vld [vmem:[%s6 + $0x70] sm:$0xff]
    %v1449 = vld [vmem:[%s6 + $0x78] sm:$0xff]
    %v1450 = vld [vmem:[%s6 + $0x80] sm:$0xff]
    %v1451 = vld [vmem:[%s6 + $0x88] sm:$0xff]
    %v1452 = vld [vmem:[%s6 + $0x90] sm:$0xff]
    %v1453 = vld [vmem:[%s6 + $0x98] sm:$0xff]
    %v1454 = vld [vmem:[%s6 + $0xa0] sm:$0xff]
    %v1455 = vld [vmem:[%s6 + $0xa8] sm:$0xff]
    %v1456 = vld [vmem:[%s6 + $0xb0] sm:$0xff]
    %v1457 = vld [vmem:[%s6 + $0xb8] sm:$0xff]
    %v1458 = vld [vmem:[%s6 + $0xc0] sm:$0xff]
    %v1459 = vld [vmem:[%s6 + $0xc8] sm:$0xff]
    %v1460 = vld [vmem:[%s6 + $0xd0] sm:$0xff]
    %v1461 = vld [vmem:[%s6 + $0xd8] sm:$0xff]
    %v1462 = vld [vmem:[%s6 + $0xe0] sm:$0xff]
    %v1463 = vld [vmem:[%s6 + $0xe8] sm:$0xff]
    %v1464 = vld [vmem:[%s6 + $0xf0] sm:$0xff]
    %v1465 = vld [vmem:[%s6 + $0xf8] sm:$0xff]
    %v1498 = vunpack.c.l.b16 %v1434
    %v1499 = vunpack.c.h.b16 %v1434
    %v1500 = vunpack.c.l.b16 %v1435
    %v1501 = vunpack.c.h.b16 %v1435
    %v1502 = vunpack.c.l.b16 %v1436
    %v1503 = vunpack.c.h.b16 %v1436
    %v1504 = vunpack.c.l.b16 %v1437
    %v1505 = vunpack.c.h.b16 %v1437
    %v1506 = vunpack.c.l.b16 %v1438
    %v1507 = vunpack.c.h.b16 %v1438
    %v1508 = vunpack.c.l.b16 %v1439
    %v1509 = vunpack.c.h.b16 %v1439
    %v1510 = vunpack.c.l.b16 %v1440
    %v1511 = vunpack.c.h.b16 %v1440
    %v1512 = vunpack.c.l.b16 %v1441
    %v1513 = vunpack.c.h.b16 %v1441
    %v1514 = vunpack.c.l.b16 %v1442
    %v1515 = vunpack.c.h.b16 %v1442
    %v1516 = vunpack.c.l.b16 %v1443
    %v1517 = vunpack.c.h.b16 %v1443
    %v1518 = vunpack.c.l.b16 %v1444
    %v1519 = vunpack.c.h.b16 %v1444
    %v1520 = vunpack.c.l.b16 %v1445
    %v1521 = vunpack.c.h.b16 %v1445
    %v1522 = vunpack.c.l.b16 %v1446
    %v1523 = vunpack.c.h.b16 %v1446
    %v1524 = vunpack.c.l.b16 %v1447
    %v1525 = vunpack.c.h.b16 %v1447
    %v1526 = vunpack.c.l.b16 %v1448
    %v1527 = vunpack.c.h.b16 %v1448
    %v1528 = vunpack.c.l.b16 %v1449
    %v1529 = vunpack.c.h.b16 %v1449
    %v1530 = vunpack.c.l.b16 %v1450
    %v1531 = vunpack.c.h.b16 %v1450
    %v1532 = vunpack.c.l.b16 %v1451
    %v1533 = vunpack.c.h.b16 %v1451
    %v1534 = vunpack.c.l.b16 %v1452
    %v1535 = vunpack.c.h.b16 %v1452
    %v1536 = vunpack.c.l.b16 %v1453
    %v1537 = vunpack.c.h.b16 %v1453
    %v1538 = vunpack.c.l.b16 %v1454
    %v1539 = vunpack.c.h.b16 %v1454
    %v1540 = vunpack.c.l.b16 %v1455
    %v1541 = vunpack.c.h.b16 %v1455
    %v1542 = vunpack.c.l.b16 %v1456
    %v1543 = vunpack.c.h.b16 %v1456
    %v1544 = vunpack.c.l.b16 %v1457
    %v1545 = vunpack.c.h.b16 %v1457
    %v1546 = vunpack.c.l.b16 %v1458
    %v1547 = vunpack.c.h.b16 %v1458
    %v1548 = vunpack.c.l.b16 %v1459
    %v1549 = vunpack.c.h.b16 %v1459
    %v1550 = vunpack.c.l.b16 %v1460
    %v1551 = vunpack.c.h.b16 %v1460
    %v1552 = vunpack.c.l.b16 %v1461
    %v1553 = vunpack.c.h.b16 %v1461
    %v1554 = vunpack.c.l.b16 %v1462
    %v1555 = vunpack.c.h.b16 %v1462
    %v1556 = vunpack.c.l.b16 %v1463
    %v1557 = vunpack.c.h.b16 %v1463
    %v1558 = vunpack.c.l.b16 %v1464
    %v1559 = vunpack.c.h.b16 %v1464
    %v1560 = vunpack.c.l.b16 %v1465
    %v1561 = vunpack.c.h.b16 %v1465
    %v1562 = vpack.c.b16 %v1502, %v1498
    %v1563 = vpack.c.b16 %v1503, %v1499
    %v1564 = vpack.c.b16 %v1504, %v1500
    %v1565 = vpack.c.b16 %v1505, %v1501
    %v1566 = vpack.c.b16 %v1510, %v1506
    %v1567 = vpack.c.b16 %v1511, %v1507
    %v1568 = vpack.c.b16 %v1512, %v1508
    %v1569 = vpack.c.b16 %v1513, %v1509
    %v1570 = vpack.c.b16 %v1518, %v1514
    %v1571 = vpack.c.b16 %v1519, %v1515
    %v1572 = vpack.c.b16 %v1520, %v1516
    %v1573 = vpack.c.b16 %v1521, %v1517
    %v1574 = vpack.c.b16 %v1526, %v1522
    %v1575 = vpack.c.b16 %v1527, %v1523
    %v1576 = vpack.c.b16 %v1528, %v1524
    %v1577 = vpack.c.b16 %v1529, %v1525
    %v1578 = vpack.c.b16 %v1534, %v1530
    %v1579 = vpack.c.b16 %v1535, %v1531
    %v1580 = vpack.c.b16 %v1536, %v1532
    %v1581 = vpack.c.b16 %v1537, %v1533
    %v1582 = vpack.c.b16 %v1542, %v1538
    %v1583 = vpack.c.b16 %v1543, %v1539
    %v1584 = vpack.c.b16 %v1544, %v1540
    %v1585 = vpack.c.b16 %v1545, %v1541
    %v1586 = vpack.c.b16 %v1550, %v1546
    %v1587 = vpack.c.b16 %v1551, %v1547
    %v1588 = vpack.c.b16 %v1552, %v1548
    %v1589 = vpack.c.b16 %v1553, %v1549
    %v1590 = vpack.c.b16 %v1558, %v1554
    %v1591 = vpack.c.b16 %v1559, %v1555
    %v1592 = vpack.c.b16 %v1560, %v1556
    %v1593 = vpack.c.b16 %v1561, %v1557
    %1626 = vmatprep.subr.bf16.mxu0 %v1591
    %1627 = vmatpush1.bf16.msra.mxu0 %v1590
    %1628 = vmatprep.subr.bf16.mxu0 %v1587
    %1629 = vmatpush1.bf16.msra.mxu0 %v1586
    %1630 = vmatprep.subr.bf16.mxu0 %v1583
    %1631 = vmatpush1.bf16.msra.mxu0 %v1582
    %1632 = vmatprep.subr.bf16.mxu0 %v1579
    %1633 = vmatpush1.bf16.msra.mxu0 %v1578
    %1634 = vmatprep.subr.bf16.mxu0 %v1575
    %1635 = vmatpush1.bf16.msra.mxu0 %v1574
    %1636 = vmatprep.subr.bf16.mxu0 %v1571
    %1637 = vmatpush1.bf16.msra.mxu0 %v1570
    %1638 = vmatprep.subr.bf16.mxu0 %v1567
    %1639 = vmatpush1.bf16.msra.mxu0 %v1566
    %1640 = vmatprep.subr.bf16.mxu0 %v1563
    %1641 = vmatpush1.bf16.msra.mxu0 %v1562
    %1642 = vmatprep.subr.bf16.mxu0 0
    %1643 = vmatpush2.bf16.msra.mxu0 0
    %1644 = vmatprep.subr.bf16.mxu0 0
    %1645 = vmatpush2.bf16.msra.mxu0 0
    %1646 = vmatprep.subr.bf16.mxu0 0
    %1647 = vmatpush2.bf16.msra.mxu0 0
    %1648 = vmatprep.subr.bf16.mxu0 0
    %1649 = vmatpush2.bf16.msra.mxu0 0
    %1650 = vmatprep.subr.bf16.mxu0 0
    %1651 = vmatpush2.bf16.msra.mxu0 0
    %1652 = vmatprep.subr.bf16.mxu0 0
    %1653 = vmatpush2.bf16.msra.mxu0 0
    %1654 = vmatprep.subr.bf16.mxu0 0
    %1655 = vmatpush2.bf16.msra.mxu0 0
    %1656 = vmatprep.subr.bf16.mxu0 0
    %1657 = vmatpush2.bf16.msra.mxu0 0
    %1658 = vmatprep.mubr.bf16.mxu0 0
    %1659 = vmatmul.mubr.bf16.gmra.mxu0 %v1433
    %v1660 = vpop.f32.mrf.mxu0
    %v1661 = vadd.f32 0.0, %v1660
    %v1662 = vpop.f32.mrf.mxu0
    %v1663 = vadd.f32 0.0, %v1662
    %v1664 = vpop.f32.mrf.mxu0
    %v1665 = vadd.f32 0.0, %v1664
    %v1666 = vpop.f32.mrf.mxu0
    %v1667 = vadd.f32 0.0, %v1666
    %1668 = vdwg.mxu0
    %1669 = vmatprep.subr.bf16.mxu0 %v1593
    %1670 = vmatpush1.bf16.msra.mxu0 %v1592
    %1671 = vmatprep.subr.bf16.mxu0 %v1589
    %1672 = vmatpush1.bf16.msra.mxu0 %v1588
    %1673 = vmatprep.subr.bf16.mxu0 %v1585
    %1674 = vmatpush1.bf16.msra.mxu0 %v1584
    %1675 = vmatprep.subr.bf16.mxu0 %v1581
    %1676 = vmatpush1.bf16.msra.mxu0 %v1580
    %1677 = vmatprep.subr.bf16.mxu0 %v1577
    %1678 = vmatpush1.bf16.msra.mxu0 %v1576
    %1679 = vmatprep.subr.bf16.mxu0 %v1573
    %1680 = vmatpush1.bf16.msra.mxu0 %v1572
    %1681 = vmatprep.subr.bf16.mxu0 %v1569
    %1682 = vmatpush1.bf16.msra.mxu0 %v1568
    %1683 = vmatprep.subr.bf16.mxu0 %v1565
    %1684 = vmatpush1.bf16.msra.mxu0 %v1564
    %1685 = vmatprep.subr.bf16.mxu0 0
    %1686 = vmatpush2.bf16.msra.mxu0 0
    %1687 = vmatprep.subr.bf16.mxu0 0
    %1688 = vmatpush2.bf16.msra.mxu0 0
    %1689 = vmatprep.subr.bf16.mxu0 0
    %1690 = vmatpush2.bf16.msra.mxu0 0
    %1691 = vmatprep.subr.bf16.mxu0 0
    %1692 = vmatpush2.bf16.msra.mxu0 0
    %1693 = vmatprep.subr.bf16.mxu0 0
    %1694 = vmatpush2.bf16.msra.mxu0 0
    %1695 = vmatprep.subr.bf16.mxu0 0
    %1696 = vmatpush2.bf16.msra.mxu0 0
    %1697 = vmatprep.subr.bf16.mxu0 0
    %1698 = vmatpush2.bf16.msra.mxu0 0
    %1699 = vmatprep.subr.bf16.mxu0 0
    %1700 = vmatpush2.bf16.msra.mxu0 0
    %1701 = vmatprep.mubr.bf16.mxu0 0
    %1702 = vmatmul.mubr.bf16.gmra.mxu0 %v1433
    %v1703 = vpop.f32.mrf.mxu0
    %v1704 = vadd.f32 0.0, %v1703
    %v1705 = vpop.f32.mrf.mxu0
    %v1706 = vadd.f32 0.0, %v1705
    %v1707 = vpop.f32.mrf.mxu0
    %v1708 = vadd.f32 0.0, %v1707
    %v1709 = vpop.f32.mrf.mxu0
    %v1710 = vadd.f32 0.0, %v1709
    %1711 = vdwg.mxu0
    %v1712 = vadd.f32 %v1425, %v1661
    %v1713 = vadd.f32 %v1426, %v1663
    %v1714 = vadd.f32 %v1427, %v1704
    %v1715 = vadd.f32 %v1428, %v1706
    %v1716 = vadd.f32 %v1429, %v1665
    %v1717 = vadd.f32 %v1430, %v1667
    %v1718 = vadd.f32 %v1431, %v1708
    %v1719 = vadd.f32 %v1432, %v1710
    %v1720 = vxor.u32 %v1712, 2147483648
    %v1721 = vxor.u32 %v1716, 2147483648
    %v1722 = vmul.f32 %v1720, 1.442695
    %v1723 = vpow.pop %v1722
    %v1724 = vmul.f32 %v1721, 1.442695
    %v1725 = vpow.pop %v1724
    %v1726 = vadd.f32 %v1723, 1.0
    %v1727 = vadd.f32 %v1725, 1.0
    %v1728 = vrcp.pop %v1726
    %v1729 = vmul.f32 1.0, %v1728
    %v1730 = vrcp.pop %v1727
    %v1731 = vmul.f32 1.0, %v1730
    %v1732 = vxor.u32 %v1713, 2147483648
    %v1733 = vxor.u32 %v1717, 2147483648
    %v1734 = vmul.f32 %v1732, 1.442695
    %v1735 = vpow.pop %v1734
    %v1736 = vmul.f32 %v1733, 1.442695
    %v1737 = vpow.pop %v1736
    %v1738 = vadd.f32 %v1735, 1.0
    %v1739 = vadd.f32 %v1737, 1.0
    %v1740 = vrcp.pop %v1738
    %v1741 = vmul.f32 1.0, %v1740
    %v1742 = vrcp.pop %v1739
    %v1743 = vmul.f32 1.0, %v1742
    %v1744 = vtanh.pop %v1714
    %v1745 = vtanh.pop %v1718
    %v1746 = vxor.u32 %v1715, 2147483648
    %v1747 = vxor.u32 %v1719, 2147483648
    %v1748 = vmul.f32 %v1746, 1.442695
    %v1749 = vpow.pop %v1748
    %v1750 = vmul.f32 %v1747, 1.442695
    %v1751 = vpow.pop %v1750
    %v1752 = vadd.f32 %v1749, 1.0
    %v1753 = vadd.f32 %v1751, 1.0
    %v1754 = vrcp.pop %v1752
    %v1755 = vmul.f32 1.0, %v1754
    %v1756 = vrcp.pop %v1753
    %v1757 = vmul.f32 1.0, %v1756
    %v1758 = vmul.f32 %v1741, %v1420
    %v1759 = vmul.f32 %v1743, %v1421
    %v1760 = vmul.f32 %v1729, %v1744
    %v1761 = vmul.f32 %v1731, %v1745
    %v1762 = vadd.f32 %v1758, %v1760
    %v1763 = vadd.f32 %v1759, %v1761
    %v1764 = vtanh.pop %v1762
    %v1765 = vtanh.pop %v1763
    %v1766 = vmul.f32 %v1755, %v1764
    %v1767 = vmul.f32 %v1757, %v1765
    %v1768 = vstv %s1413
    %vm1769 = vcmp.lt.s32.totalorder %v1768, %v1407
    %vm1770 = vcmp.lt.s32.totalorder %v1768, %v1408
    %v1771 = vsel %vm1769, 1, 0
    %v1772 = vsel %vm1770, 1, 0
    %1773 = vset.pattern.permute.xlu0 0
    %1774 = vperm.xlu0 %1773, %v1771
    %v1775 = vpop.permute.xlu0 %1774
    %1776 = vset.pattern.permute.xlu0 0
    %1777 = vperm.xlu0 %1776, %v1772
    %v1778 = vpop.permute.xlu0 %1777
    %vm1779 = vcmp.eq.s32.totalorder %v1775, 1
    %vm1780 = vcmp.eq.s32.totalorder %v1778, 1
    %v1781 = vsel %vm1779, %v1766, 0.0
    %v1782 = vsel %vm1780, %v1767, 0.0
    %s1783 = smul.u32 %s1413, 16
    %s1784 = scalar_lea.vmem %s9, %s1783
    %1785 = vst [vmem:[%s1784] sm:$0xff] %v1781
    %1786 = vst [vmem:[%s1784 + $0x8] sm:$0xff] %v1782
  $region34: #{question_processor_forward.1} parent=0 // loop_footer
    %s1415 = sadd.s32 %s1413, 1
  $region35: #{question_processor_forward.1} parent=0 // loop_footer_branch
    %1412 = sbr.rel target = $region31
  $region36: #{question_processor_forward.1} parent=0 // loop_exit
    _
  // While loop
  $region37: #{question_processor_forward.1} parent=0 // loop_pre_header
    _
  $region38: #{question_processor_forward.1} parent=0 // loop_header
    %s1788 = sphi %s1411, %s1790
    %p1789 = scmp.ge.s32.totalorder %s1788, 8
  $region39: #{question_processor_forward.1} parent=0 // loop_header_branch
    %1792 = sbr.rel (%p1789) target = $region43
  $region40: #{question_processor_forward.1} parent=0 // loop_body
    %s1793 = smul.u32 %s1788, 16
    %s1794 = scalar_lea.vmem %s9, %s1793
    %1795 = vst [vmem:[%s1794] sm:$0xff] 0.0
    %1796 = vst [vmem:[%s1794 + $0x8] sm:$0xff] 0.0
  $region41: #{question_processor_forward.1} parent=0 // loop_footer
    %s1790 = sadd.s32 %s1788, 1
  $region42: #{question_processor_forward.1} parent=0 // loop_footer_branch
    %1787 = sbr.rel target = $region38
  $region43: #{question_processor_forward.1} parent=0 // loop_exit
    _
  // Predicated region
  $region44: #{question_processor_forward.1} parent=0 // pred_check
    _
  $region45: #{question_processor_forward.1} parent=0 // pred_check_branch
    %1798 = sbr.rel (0) target = $region47
  $region46: #{question_processor_forward.1} parent=0 // pred_region
    _
  $region47: #{question_processor_forward.1} parent=0 // pred_fallthru
    _
  // Predicated region
  $region48: #{question_processor_forward.1} parent=0 // pred_check
    _
  $region49: #{question_processor_forward.1} parent=0 // pred_check_branch
    %1800 = sbr.rel (0) target = $region51
  $region50: #{question_processor_forward.1} parent=0 // pred_region
    _
  $region51: #{question_processor_forward.1} parent=0 // pred_fallthru
    _
  // Predicated region
  $region52: #{question_processor_forward.1} parent=0 // pred_check
    _
  $region53: #{question_processor_forward.1} parent=0 // pred_check_branch
    %1802 = sbr.rel (0) target = $region55
  $region54: #{question_processor_forward.1} parent=0 // pred_region
    _
  $region55: #{question_processor_forward.1} parent=0 // pred_fallthru
    _
  // Predicated region
  $region56: #{question_processor_forward.1} parent=0 // pred_check
    _
  $region57: #{question_processor_forward.1} parent=0 // pred_check_branch
    %1804 = sbr.rel (0) target = $region59
  $region58: #{question_processor_forward.1} parent=0 // pred_region
    _
  $region59: #{question_processor_forward.1} parent=0 // pred_fallthru
    _

</llo_original>
